<compile_context>
chip_gen: v7x
topology: tpu7x:2x2x1
jax: 0.10.0
libtpu: 0.0.40
codegen_flags: <defaults>
</compile_context>

<pallas_src>
import functools

import jax
import jax.numpy as jnp
from jax import lax
from jax.experimental import pallas as pl
from jax.experimental.pallas import tpu as pltpu

SCALER = 20.0


def _round_up(x, m):
    return (x + m - 1) // m * m


# ---------------------------------------------------------------------------
# Kernel 1: encoder Conv2d(ch, hid, kernel_size=2, stride=2) as im2col matmul.
# ---------------------------------------------------------------------------
def _matmul_bias_kernel(x_ref, w_ref, b_ref, o_ref):
    acc = jnp.dot(x_ref[...], w_ref[...], preferred_element_type=jnp.float32)
    o_ref[...] = (acc + b_ref[...]).astype(o_ref.dtype)


def matmul_bias(x, w, b, tm=512):
    """x: (M, K) bf16, w: (K, Np) bf16, b: (1, Np) f32 -> (M, Np) f32."""
    M, K = x.shape
    Np = w.shape[1]
    tm = tm if M >= tm else _round_up(max(M, 1), 128)
    M_pad = _round_up(M, tm)
    xp = jnp.pad(x, ((0, M_pad - M), (0, 0)))
    out = pl.pallas_call(
        _matmul_bias_kernel,
        out_shape=jax.ShapeDtypeStruct((M_pad, Np), jnp.float32),
        grid=(M_pad // tm,),
        in_specs=[
            pl.BlockSpec((tm, K), lambda i: (i, 0)),
            pl.BlockSpec((K, Np), lambda i: (0, 0)),
            pl.BlockSpec((1, Np), lambda i: (0, 0)),
        ],
        out_specs=pl.BlockSpec((tm, Np), lambda i: (i, 0)),
        compiler_params=pltpu.CompilerParams(dimension_semantics=("parallel",)),
    )(xp, w, b)
    return out[:M]


def encoder_apply(x, w, b):
    """Conv2d(ch, hid, kernel_size=2, stride=2) -> channels-last features.

    x: (T, ch, H, W) -> (T, H//2, W//2, hid)
    """
    T, ch, H, W = x.shape
    hid = w.shape[0]
    Hp, Wp = H // 2, W // 2
    patches = (
        x.reshape(T, ch, Hp, 2, Wp, 2)
        .transpose(0, 2, 4, 1, 3, 5)
        .reshape(T * Hp * Wp, ch * 4)
    ).astype(jnp.bfloat16)
    Np = _round_up(hid, 128)  # lane-dense (unmasked) output stores
    wm = jnp.pad(w.reshape(hid, ch * 4).T.astype(jnp.bfloat16), ((0, 0), (0, Np - hid)))
    bm = jnp.pad(b.reshape(1, hid).astype(jnp.float32), ((0, 0), (0, Np - hid)))
    out = matmul_bias(patches, wm, bm)              # (T*Hp*Wp, Np) f32
    return out[:, :hid].reshape(T, Hp, Wp, hid)


# ---------------------------------------------------------------------------
# Kernel 2: masked average pooling (prototypes).  Reduce over HW on the MXU,
# channel dim stays lane-dense; grid over the group axis.
# ---------------------------------------------------------------------------
def _masked_pool_kernel(f_ref, m_ref, o_ref, *, eps):
    f = f_ref[0]                                     # (HW, C) f32
    m = m_ref[0]                                     # (S, HW) f32
    num = lax.dot_general(m, f, (((1,), (0,)), ((), ())),
                          preferred_element_type=jnp.float32)   # (S, C)
    den = jnp.sum(m, axis=-1, keepdims=True) + eps               # (S, 1)
    o_ref[0] = (num / den).astype(o_ref.dtype)


def masked_avg_pool(fts_rows, masks, eps=1e-5):
    """fts_rows: (G, HW, C), masks: (G, S, HW) -> (G, S, C) f32."""
    G, HW, C = fts_rows.shape
    S = masks.shape[1]
    return pl.pallas_call(
        functools.partial(_masked_pool_kernel, eps=eps),
        out_shape=jax.ShapeDtypeStruct((G, S, C), jnp.float32),
        grid=(G,),
        in_specs=[
            pl.BlockSpec((1, HW, C), lambda g: (g, 0, 0)),
            pl.BlockSpec((1, S, HW), lambda g: (g, 0, 0)),
        ],
        out_specs=pl.BlockSpec((1, S, C), lambda g: (g, 0, 0)),
        compiler_params=pltpu.CompilerParams(dimension_semantics=("parallel",)),
    )(fts_rows.astype(jnp.float32), masks.astype(jnp.float32))


# ---------------------------------------------------------------------------
# Kernel 3: scaled cosine similarity.  Output layout (P, M) so the big axis M
# (multiple of 128) is lane-dense; norms via rsqrt broadcasts (no denom matmul).
# ---------------------------------------------------------------------------
def _cosine_kernel(p_ref, f_ref, o_ref, *, scaler, eps):
    p = p_ref[0]                                     # (P, C) bf16
    f = f_ref[0]                                     # (tm, C) bf16
    dn = (((1,), (1,)), ((), ()))
    dots = lax.dot_general(p, f, dn, preferred_element_type=jnp.float32)     # (P, tm)
    f32 = f.astype(jnp.float32)
    ones = jnp.ones((1, f32.shape[1]), jnp.float32)
    fsq = lax.dot_general(ones, f32 * f32, dn,
                          preferred_element_type=jnp.float32)                 # (1, tm)
    p32 = p.astype(jnp.float32)
    psq = jnp.sum(p32 * p32, axis=-1, keepdims=True)                          # (P, 1)
    inv = lax.rsqrt(jnp.maximum(fsq, eps * eps)) * lax.rsqrt(jnp.maximum(psq, eps * eps))
    o_ref[0] = (dots * inv * scaler).astype(o_ref.dtype)


def cosine_scores(fts_rows, prototypes, scaler):
    """fts_rows: (G, M, C), prototypes: (G, P, C) -> (G, P, M) f32 (scaled cosine)."""
    G, M, C = fts_rows.shape
    P = prototypes.shape[1]
    tm = 512 if M >= 512 else _round_up(max(M, 1), 128)
    M_pad = _round_up(M, tm)
    f = jnp.pad(fts_rows, ((0, 0), (0, M_pad - M), (0, 0))).astype(jnp.bfloat16)
    p = prototypes.astype(jnp.bfloat16)
    out = pl.pallas_call(
        functools.partial(_cosine_kernel, scaler=scaler, eps=1e-8),
        out_shape=jax.ShapeDtypeStruct((G, P, M_pad), jnp.float32),
        grid=(G, M_pad // tm),
        in_specs=[
            pl.BlockSpec((1, P, C), lambda g, i: (g, 0, 0)),
            pl.BlockSpec((1, tm, C), lambda g, i: (g, i, 0)),
        ],
        out_specs=pl.BlockSpec((1, P, tm), lambda g, i: (g, 0, i)),
        compiler_params=pltpu.CompilerParams(
            dimension_semantics=("parallel", "parallel")),
    )(p, f)
    return out[:, :, :M]


# ---------------------------------------------------------------------------
# Kernel 4: per-group mean softmax cross-entropy (2 classes), gridded over
# (group, row-tile) with a running-sum accumulator; spatial dim lane-dense.
# ---------------------------------------------------------------------------
def _ce_kernel(l_ref, t_ref, o_ref, acc_ref, *, total):
    r = pl.program_id(1)

    @pl.when(r == 0)
    def _():
        acc_ref[...] = jnp.zeros_like(acc_ref)

    l = l_ref[0]                                     # (2, tr) f32
    t = t_ref[0]                                     # (1, tr) f32 in {0, 1}
    l0 = l[0:1, :]
    l1 = l[1:2, :]
    mx = jnp.maximum(l0, l1)
    lse = mx + jnp.log(jnp.exp(l0 - mx) + jnp.exp(l1 - mx))
    picked = jnp.where(t > 0.5, l1, l0)
    tr = l.shape[1]
    idx = r * tr + lax.broadcasted_iota(jnp.int32, (1, tr), 1)
    valid = (idx < total).astype(jnp.float32)
    acc_ref[...] = acc_ref[...] + jnp.sum((lse - picked) * valid)

    @pl.when(r == pl.num_programs(1) - 1)
    def _():
        o_ref[0] = jnp.broadcast_to(acc_ref[...] / total, o_ref.shape[1:]).astype(o_ref.dtype)


def cross_entropy_mean(logits, targets):
    """logits: (G, 2, R), targets: (G, R) in {0,1} -> (G,) mean CE per group."""
    G, _, R = logits.shape
    tr = 512 if R >= 512 else _round_up(max(R, 1), 128)
    R_pad = _round_up(R, tr)
    l = jnp.pad(logits.astype(jnp.float32), ((0, 0), (0, 0), (0, R_pad - R)))
    t = jnp.pad(targets.astype(jnp.float32), ((0, 0), (0, R_pad - R))).reshape(G, 1, R_pad)
    out = pl.pallas_call(
        functools.partial(_ce_kernel, total=R),
        out_shape=jax.ShapeDtypeStruct((G, 1, 128), jnp.float32),
        grid=(G, R_pad // tr),
        in_specs=[
            pl.BlockSpec((1, 2, tr), lambda g, r: (g, 0, r)),
            pl.BlockSpec((1, 1, tr), lambda g, r: (g, 0, r)),
        ],
        out_specs=pl.BlockSpec((1, 1, 128), lambda g, r: (g, 0, 0)),
        scratch_shapes=[pltpu.VMEM((1, 1), jnp.float32)],
        compiler_params=pltpu.CompilerParams(
            dimension_semantics=("parallel", "arbitrary")),
    )(l, t)
    return out[:, 0, 0]


# ---------------------------------------------------------------------------
# Glue (resize adjoint, orchestration).
# ---------------------------------------------------------------------------
def _resize_matrix(src, dst):
    """1-D bilinear interpolation matrix (dst, src) matching jax.image.resize."""
    # TODO(synk): bilinear resize (F.interpolate align_corners=False) kept in plain
    # JAX via jax.image.resize; no clean Pallas formulation at these sizes.
    return jax.image.resize(jnp.eye(src, dtype=jnp.float32), (dst, src), method="bilinear")


def alignment_loss_batched(qry_fts, pred, supp_fts, fg_mask, n_way, k_shot, scaler=SCALER):
    """Batched, fully on-device prototype-alignment loss.

    qry_fts:  (B, N, Hp, Wp, C)    pred:    (B, N, 1+n_way, Hp, Wp)
    supp_fts: (B, n_way, k_shot, Hp, Wp, C)  fg_mask: (B, n_way, k_shot, H, W)
    """
    B, N, Hp, Wp, C = qry_fts.shape
    P = 1 + n_way
    H, W = fg_mask.shape[-2:]

    pred_cls = jnp.argmax(pred, axis=2)                                    # (B, N, Hp, Wp)
    cls_ids = jnp.arange(P, dtype=pred_cls.dtype).reshape(1, 1, P, 1, 1)
    bin_masks = (pred_cls[:, :, None] == cls_ids).astype(jnp.float32)      # (B, N, P, Hp, Wp)

    # Query prototypes per predicted class: one batched masked-pool launch.
    q_rows = qry_fts.reshape(B * N, Hp * Wp, C)
    m_rows = bin_masks.reshape(B * N, P, Hp * Wp)
    q_protos = masked_avg_pool(q_rows, m_rows).reshape(B, N, P, C).mean(axis=1)  # (B, P, C)

    # Per-way [background, foreground-way] prototype pairs.
    bg = jnp.broadcast_to(q_protos[:, :1, :], (B, n_way, C))
    pairs = jnp.stack([bg, q_protos[:, 1:, :]], axis=2)                    # (B, n_way, 2, C)

    # Score support features against the query prototypes (one batched launch).
    supp_rows = supp_fts.reshape(B * n_way, k_shot * Hp * Wp, C)
    scores = cosine_scores(supp_rows, pairs.reshape(B * n_way, 2, C), scaler)
    supp_pred = scores.reshape(B, n_way, 2, k_shot, Hp, Wp)
    supp_pred = jax.image.resize(
        supp_pred, (B, n_way, 2, k_shot, H, W), method="bilinear")

    # Mean CE per (batch, way) group (one batched launch).
    logits = supp_pred.reshape(B * n_way, 2, k_shot * H * W)
    targets = fg_mask.reshape(B * n_way, k_shot * H * W)
    ce = cross_entropy_mean(logits, targets).reshape(B, n_way)

    # Ways with an empty predicted mask contribute zero (matches the reference,
    # which skips them), keeping the class selection on-device / jittable.
    nonempty = (jnp.sum(bin_masks, axis=(1, 3, 4))[:, 1:] > 0).astype(jnp.float32)
    n_nz = jnp.maximum(jnp.sum(nonempty, axis=1), 1.0)
    return jnp.sum(jnp.sum(nonempty * ce, axis=1) / n_nz)


def panet_forward(supp_img, supp_mask, qry_img, params, n_way, k_shot,
                  prototype_alignment=True, scaler=SCALER):
    B = supp_img.shape[0]
    H, W = supp_img.shape[-2:]
    ch = supp_img.shape[-3]
    N = qry_img.shape[1]
    NK = n_way * k_shot

    fg_mask = supp_mask.reshape(B, NK, H, W).astype(jnp.float32)
    bg_mask = (fg_mask == 0).astype(jnp.float32)

    img_concat = jnp.concatenate(
        [supp_img.reshape(-1, ch, H, W), qry_img.reshape(-1, ch, H, W)], axis=0)
    feats = encoder_apply(img_concat, params["w"], params["b"])     # (T, Hp, Wp, hid)
    Hp, Wp, hid = feats.shape[1:]
    n_supp = B * NK
    supp_fts = feats[:n_supp].reshape(B, n_way, k_shot, Hp, Wp, hid)
    qry_fts = feats[n_supp:].reshape(B, N, Hp, Wp, hid)

    # Pool at feature resolution: push the bilinear feature upsample onto the
    # mask via its exact adjoint (resize is linear), avoiding the blown-up
    # (NK, C, H, W) intermediate entirely.
    Mh = _resize_matrix(Hp, H)                                      # (H, Hp)
    Mw = _resize_matrix(Wp, W)                                      # (W, Wp)

    def down(m):                                                    # (..., H, W) -> (..., Hp, Wp)
        return jnp.einsum("ih,...ij,jw->...hw", Mh, m, Mw)

    fg_dn, bg_dn = down(fg_mask), down(bg_mask)                     # (B, NK, Hp, Wp)

    # Support prototypes: one batched masked-pool launch (fg + bg per sample).
    supp_rows = supp_fts.reshape(B * NK, Hp * Wp, hid)
    pool_masks = jnp.stack([fg_dn, bg_dn], axis=2).reshape(B * NK, 2, Hp * Wp)
    pooled = masked_avg_pool(supp_rows, pool_masks).reshape(B, n_way, k_shot, 2, hid)
    fg_proto = pooled[..., 0, :].mean(axis=2)                       # (B, n_way, hid)
    bg_proto = pooled[..., 1, :].mean(axis=(1, 2))                  # (B, hid)
    prototypes = jnp.concatenate([bg_proto[:, None, :], fg_proto], axis=1)  # (B, 1+n_way, hid)

    # Query predictions: one batched cosine launch across the whole batch.
    qry_rows = qry_fts.reshape(B, N * Hp * Wp, hid)
    scores = cosine_scores(qry_rows, prototypes, scaler)            # (B, 1+n_way, N*Hp*Wp)
    pred = scores.reshape(B, 1 + n_way, N, Hp, Wp).transpose(0, 2, 1, 3, 4)

    output = jax.image.resize(pred, (B, N, 1 + n_way, H, W), method="bilinear")
    output = output.reshape(B * N, 1 + n_way, H, W)

    if prototype_alignment:
        align_loss = alignment_loss_batched(
            qry_fts, pred, supp_fts, fg_mask.reshape(B, n_way, k_shot, H, W),
            n_way, k_shot, scaler) / B
    else:
        align_loss = jnp.zeros((), jnp.float32)
    return output, align_loss.reshape(1), jnp.zeros((1,), jnp.float32)


# ---------------------------------------------------------------------------
# Demo
# ---------------------------------------------------------------------------
if __name__ == "__main__":
    key = jax.random.PRNGKey(0)
    B, n_way, k_shot, N = 2, 2, 1, 1
    ch, H, W, hid = 4, 16, 16, 32

    k1, k2, k3, k4, k5 = jax.random.split(key, 5)
    supp_img = jax.random.normal(k1, (B, n_way, k_shot, ch, H, W), jnp.float32)
    supp_mask = (jax.random.uniform(k2, (B, n_way, k_shot, 1, H, W)) > 0.5).astype(jnp.float32)
    qry_img = jax.random.normal(k3, (B, N, ch, H, W), jnp.float32)

    # Deterministic encoder parameters: Conv2d(ch, hid, kernel_size=2, stride=2)
    params = {
        "w": 0.1 * jax.random.normal(k4, (hid, ch, 2, 2), jnp.float32),
        "b": 0.01 * jax.random.normal(k5, (hid,), jnp.float32),
    }

    fwd = jax.jit(functools.partial(
        panet_forward, n_way=n_way, k_shot=k_shot, prototype_alignment=True))
    out, align_loss, t_loss = fwd(supp_img, supp_mask, qry_img, params)
    jax.block_until_ready((out, align_loss, t_loss))

    assert out.shape == (B * N, 1 + n_way, H, W), out.shape
    assert align_loss.shape == (1,) and t_loss.shape == (1,)
    assert bool(jnp.all(jnp.isfinite(out))) and bool(jnp.isfinite(align_loss[0]))
    print("KERNEL_OK")
</pallas_src>

<mosaic_0001>
module attributes {stable_mosaic.version = 11 : i64} {
  func.func @_matmul_bias_kernel(%arg0: i32, %arg1: memref<384x16xbf16, #tpu.memory_space<vmem>>, %arg2: memref<16x128xbf16, #tpu.memory_space<vmem>>, %arg3: memref<1x128xf32, #tpu.memory_space<vmem>>, %arg4: memref<384x128xf32, #tpu.memory_space<vmem>>) attributes {dimension_semantics = [#tpu.dimension_semantics<parallel>], iteration_bounds = array<i64: 1>, scalar_prefetch = 0 : i64, scratch_operands = 0 : i64, tpu.core_type = #tpu.core_type<tc>, window_params = [{transform_indices = @transform_0, window_bounds = array<i64: 384, 16>}, {pipeline_mode = #tpu.pipeline_mode<synchronous>, transform_indices = @transform_1, window_bounds = array<i64: 16, 128>}, {pipeline_mode = #tpu.pipeline_mode<synchronous>, transform_indices = @transform_2, window_bounds = array<i64: 1, 128>}, {transform_indices = @transform_3, window_bounds = array<i64: 384, 128>}]} {
    %c0 = arith.constant 0 : index
    %c0_0 = arith.constant 0 : index
    %0 = vector.load %arg1[%c0, %c0_0] : memref<384x16xbf16, #tpu.memory_space<vmem>>, vector<384x16xbf16>
    %c0_1 = arith.constant 0 : index
    %c0_2 = arith.constant 0 : index
    %1 = vector.load %arg2[%c0_1, %c0_2] : memref<16x128xbf16, #tpu.memory_space<vmem>>, vector<16x128xbf16>
    %cst = arith.constant dense<0.000000e+00> : vector<384x128xf32>
    %2 = tpu.matmul %0, %1, %cst {dimension_numbers = #tpu.dot_dimension_numbers<[1], [0], [0], [1], [0, 0, 1, 1], [], []>} : vector<384x16xbf16>, vector<16x128xbf16>, vector<384x128xf32> -> vector<384x128xf32>
    %c0_3 = arith.constant 0 : index
    %c0_4 = arith.constant 0 : index
    %3 = vector.load %arg3[%c0_3, %c0_4] : memref<1x128xf32, #tpu.memory_space<vmem>>, vector<1x128xf32>
    %4 = vector.broadcast %3 : vector<1x128xf32> to vector<384x128xf32>
    %5 = arith.addf %2, %4 : vector<384x128xf32>
    %c0_5 = arith.constant 0 : index
    %c0_6 = arith.constant 0 : index
    %6 = vector.load %arg4[%c0_5, %c0_6] : memref<384x128xf32, #tpu.memory_space<vmem>>, vector<384x128xf32>
    tpu.vector_store %arg4[%c0_5, %c0_6], %5 {strides = array<i32>} : memref<384x128xf32, #tpu.memory_space<vmem>>, vector<384x128xf32>,
    return
  }
  func.func @transform_0(%arg0: i32) -> (i32, i32) {
    %c0_i32 = arith.constant 0 : i32
    %c0_i32_0 = arith.constant 0 : i32
    return %arg0, %c0_i32 : i32, i32
  }
  func.func @transform_1(%arg0: i32) -> (i32, i32) {
    %c0_i32 = arith.constant 0 : i32
    %c0_i32_0 = arith.constant 0 : i32
    %c0_i32_1 = arith.constant 0 : i32
    return %c0_i32, %c0_i32_0 : i32, i32
  }
  func.func @transform_2(%arg0: i32) -> (i32, i32) {
    %c0_i32 = arith.constant 0 : i32
    %c0_i32_0 = arith.constant 0 : i32
    %c0_i32_1 = arith.constant 0 : i32
    return %c0_i32, %c0_i32_0 : i32, i32
  }
  func.func @transform_3(%arg0: i32) -> (i32, i32) {
    %c0_i32 = arith.constant 0 : i32
    %c0_i32_0 = arith.constant 0 : i32
    return %arg0, %c0_i32 : i32, i32
  }
}

module attributes {stable_mosaic.version = 11 : i64} {
  func.func @_masked_pool_kernel(%arg0: i32, %arg1: memref<1x64x32xf32, #tpu.memory_space<vmem>>, %arg2: memref<1x2x64xf32, #tpu.memory_space<vmem>>, %arg3: memref<1x2x32xf32, #tpu.memory_space<vmem>>) attributes {dimension_semantics = [#tpu.dimension_semantics<parallel>], iteration_bounds = array<i64: 4>, scalar_prefetch = 0 : i64, scratch_operands = 0 : i64, tpu.core_type = #tpu.core_type<tc>, window_params = [{transform_indices = @transform_0, window_bounds = array<i64: 1, 64, 32>}, {transform_indices = @transform_1, window_bounds = array<i64: 1, 2, 64>}, {transform_indices = @transform_2, window_bounds = array<i64: 1, 2, 32>}]} {
    %c0 = arith.constant 0 : index
    %c0_0 = arith.constant 0 : index
    %c0_1 = arith.constant 0 : index
    %0 = vector.load %arg1[%c0, %c0_0, %c0_1] : memref<1x64x32xf32, #tpu.memory_space<vmem>>, vector<1x64x32xf32>
    %1 = vector.shape_cast %0 : vector<1x64x32xf32> to vector<64x32xf32>
    %c0_2 = arith.constant 0 : index
    %c0_3 = arith.constant 0 : index
    %c0_4 = arith.constant 0 : index
    %2 = vector.load %arg2[%c0_2, %c0_3, %c0_4] : memref<1x2x64xf32, #tpu.memory_space<vmem>>, vector<1x2x64xf32>
    %3 = vector.shape_cast %2 : vector<1x2x64xf32> to vector<2x64xf32>
    %cst = arith.constant dense<0.000000e+00> : vector<2x32xf32>
    %4 = tpu.matmul %3, %1, %cst {dimension_numbers = #tpu.dot_dimension_numbers<[1], [0], [0], [1], [0, 0, 1, 1], [], []>} : vector<2x64xf32>, vector<64x32xf32>, vector<2x32xf32> -> vector<2x32xf32>
    %cst_5 = arith.constant dense<0.000000e+00> : vector<2xf32>
    %5 = vector.multi_reduction <add>, %3, %cst_5 [1] : vector<2x64xf32> to vector<2xf32>
    %6 = vector.shape_cast %5 : vector<2xf32> to vector<2x1xf32>
    %cst_6 = arith.constant 9.99999974E-6 : f32
    %7 = vector.broadcast %cst_6 : f32 to vector<2x1xf32>
    %8 = arith.addf %6, %7 : vector<2x1xf32>
    %9 = vector.broadcast %8 : vector<2x1xf32> to vector<2x32xf32>
    %10 = arith.divf %4, %9 : vector<2x32xf32>
    %c0_7 = arith.constant 0 : index
    %c0_8 = arith.constant 0 : index
    %c0_9 = arith.constant 0 : index
    %11 = vector.load %arg3[%c0_7, %c0_8, %c0_9] : memref<1x2x32xf32, #tpu.memory_space<vmem>>, vector<1x2x32xf32>
    %12 = vector.shape_cast %11 : vector<1x2x32xf32> to vector<2x32xf32>
    %13 = vector.shape_cast %10 : vector<2x32xf32> to vector<1x2x32xf32>
    tpu.vector_store %arg3[%c0_7, %c0_8, %c0_9], %13 {strides = array<i32>} : memref<1x2x32xf32, #tpu.memory_space<vmem>>, vector<1x2x32xf32>,
    return
  }
  func.func @transform_0(%arg0: i32) -> (i32, i32, i32) {
    %c0_i32 = arith.constant 0 : i32
    %c0_i32_0 = arith.constant 0 : i32
    %c0_i32_1 = arith.constant 0 : i32
    return %arg0, %c0_i32, %c0_i32_0 : i32, i32, i32
  }
  func.func @transform_1(%arg0: i32) -> (i32, i32, i32) {
    %c0_i32 = arith.constant 0 : i32
    %c0_i32_0 = arith.constant 0 : i32
    %c0_i32_1 = arith.constant 0 : i32
    return %arg0, %c0_i32, %c0_i32_0 : i32, i32, i32
  }
  func.func @transform_2(%arg0: i32) -> (i32, i32, i32) {
    %c0_i32 = arith.constant 0 : i32
    %c0_i32_0 = arith.constant 0 : i32
    %c0_i32_1 = arith.constant 0 : i32
    return %arg0, %c0_i32, %c0_i32_0 : i32, i32, i32
  }
}

module attributes {stable_mosaic.version = 11 : i64} {
  func.func @_cosine_kernel(%arg0: i32, %arg1: i32, %arg2: memref<1x3x32xbf16, #tpu.memory_space<vmem>>, %arg3: memref<1x128x32xbf16, #tpu.memory_space<vmem>>, %arg4: memref<1x3x128xf32, #tpu.memory_space<vmem>>) attributes {dimension_semantics = [#tpu.dimension_semantics<parallel>, #tpu.dimension_semantics<parallel>], iteration_bounds = array<i64: 2, 1>, scalar_prefetch = 0 : i64, scratch_operands = 0 : i64, tpu.core_type = #tpu.core_type<tc>, window_params = [{transform_indices = @transform_0, window_bounds = array<i64: 1, 3, 32>}, {transform_indices = @transform_1, window_bounds = array<i64: 1, 128, 32>}, {transform_indices = @transform_2, window_bounds = array<i64: 1, 3, 128>}]} {
    %c0 = arith.constant 0 : index
    %c0_0 = arith.constant 0 : index
    %c0_1 = arith.constant 0 : index
    %0 = vector.load %arg2[%c0, %c0_0, %c0_1] : memref<1x3x32xbf16, #tpu.memory_space<vmem>>, vector<1x3x32xbf16>
    %1 = vector.shape_cast %0 : vector<1x3x32xbf16> to vector<3x32xbf16>
    %c0_2 = arith.constant 0 : index
    %c0_3 = arith.constant 0 : index
    %c0_4 = arith.constant 0 : index
    %2 = vector.load %arg3[%c0_2, %c0_3, %c0_4] : memref<1x128x32xbf16, #tpu.memory_space<vmem>>, vector<1x128x32xbf16>
    %3 = vector.shape_cast %2 : vector<1x128x32xbf16> to vector<128x32xbf16>
    %cst = arith.constant dense<0.000000e+00> : vector<3x128xf32>
    %4 = tpu.matmul %1, %3, %cst {dimension_numbers = #tpu.dot_dimension_numbers<[1], [1], [0], [0], [0, 0, 1, 0], [], []>} : vector<3x32xbf16>, vector<128x32xbf16>, vector<3x128xf32> -> vector<3x128xf32>
    %5 = arith.extf %3 : vector<128x32xbf16> to vector<128x32xf32>
    %cst_5 = arith.constant 1.000000e+00 : f32
    %6 = vector.broadcast %cst_5 : f32 to vector<1x32xf32>
    %7 = arith.mulf %5, %5 : vector<128x32xf32>
    %cst_6 = arith.constant dense<0.000000e+00> : vector<1x128xf32>
    %8 = tpu.matmul %6, %7, %cst_6 {dimension_numbers = #tpu.dot_dimension_numbers<[1], [1], [0], [0], [0, 0, 1, 0], [], []>} : vector<1x32xf32>, vector<128x32xf32>, vector<1x128xf32> -> vector<1x128xf32>
    %9 = arith.extf %1 : vector<3x32xbf16> to vector<3x32xf32>
    %10 = arith.mulf %9, %9 : vector<3x32xf32>
    %cst_7 = arith.constant dense<0.000000e+00> : vector<3xf32>
    %11 = vector.multi_reduction <add>, %10, %cst_7 [1] : vector<3x32xf32> to vector<3xf32>
    %12 = vector.shape_cast %11 : vector<3xf32> to vector<3x1xf32>
    %cst_8 = arith.constant 1.000000e-16 : f32
    %13 = vector.broadcast %cst_8 : f32 to vector<1x128xf32>
    %14 = arith.maximumf %8, %13 : vector<1x128xf32>
    %15 = math.rsqrt %14 : vector<1x128xf32>
    %cst_9 = arith.constant 1.000000e-16 : f32
    %16 = vector.broadcast %cst_9 : f32 to vector<3x1xf32>
    %17 = arith.maximumf %12, %16 : vector<3x1xf32>
    %18 = math.rsqrt %17 : vector<3x1xf32>
    %19 = vector.broadcast %15 : vector<1x128xf32> to vector<3x128xf32>
    %20 = vector.broadcast %18 : vector<3x1xf32> to vector<3x128xf32>
    %21 = arith.mulf %19, %20 : vector<3x128xf32>
    %22 = arith.mulf %4, %21 : vector<3x128xf32>
    %cst_10 = arith.constant 2.000000e+01 : f32
    %23 = vector.broadcast %cst_10 : f32 to vector<3x128xf32>
    %24 = arith.mulf %22, %23 : vector<3x128xf32>
    %c0_11 = arith.constant 0 : index
    %c0_12 = arith.constant 0 : index
    %c0_13 = arith.constant 0 : index
    %25 = vector.load %arg4[%c0_11, %c0_12, %c0_13] : memref<1x3x128xf32, #tpu.memory_space<vmem>>, vector<1x3x128xf32>
    %26 = vector.shape_cast %25 : vector<1x3x128xf32> to vector<3x128xf32>
    %27 = vector.shape_cast %24 : vector<3x128xf32> to vector<1x3x128xf32>
    tpu.vector_store %arg4[%c0_11, %c0_12, %c0_13], %27 {strides = array<i32>} : memref<1x3x128xf32, #tpu.memory_space<vmem>>, vector<1x3x128xf32>,
    return
  }
  func.func @transform_0(%arg0: i32, %arg1: i32) -> (i32, i32, i32) {
    %c0_i32 = arith.constant 0 : i32
    %c0_i32_0 = arith.constant 0 : i32
    %c0_i32_1 = arith.constant 0 : i32
    return %arg0, %c0_i32, %c0_i32_0 : i32, i32, i32
  }
  func.func @transform_1(%arg0: i32, %arg1: i32) -> (i32, i32, i32) {
    %c0_i32 = arith.constant 0 : i32
    %c0_i32_0 = arith.constant 0 : i32
    return %arg0, %arg1, %c0_i32 : i32, i32, i32
  }
  func.func @transform_2(%arg0: i32, %arg1: i32) -> (i32, i32, i32) {
    %c0_i32 = arith.constant 0 : i32
    %c0_i32_0 = arith.constant 0 : i32
    return %arg0, %c0_i32, %arg1 : i32, i32, i32
  }
}

module attributes {stable_mosaic.version = 11 : i64} {
  func.func @_masked_pool_kernel(%arg0: i32, %arg1: memref<1x64x32xf32, #tpu.memory_space<vmem>>, %arg2: memref<1x3x64xf32, #tpu.memory_space<vmem>>, %arg3: memref<1x3x32xf32, #tpu.memory_space<vmem>>) attributes {dimension_semantics = [#tpu.dimension_semantics<parallel>], iteration_bounds = array<i64: 2>, scalar_prefetch = 0 : i64, scratch_operands = 0 : i64, tpu.core_type = #tpu.core_type<tc>, window_params = [{transform_indices = @transform_0, window_bounds = array<i64: 1, 64, 32>}, {transform_indices = @transform_1, window_bounds = array<i64: 1, 3, 64>}, {transform_indices = @transform_2, window_bounds = array<i64: 1, 3, 32>}]} {
    %c0 = arith.constant 0 : index
    %c0_0 = arith.constant 0 : index
    %c0_1 = arith.constant 0 : index
    %0 = vector.load %arg1[%c0, %c0_0, %c0_1] : memref<1x64x32xf32, #tpu.memory_space<vmem>>, vector<1x64x32xf32>
    %1 = vector.shape_cast %0 : vector<1x64x32xf32> to vector<64x32xf32>
    %c0_2 = arith.constant 0 : index
    %c0_3 = arith.constant 0 : index
    %c0_4 = arith.constant 0 : index
    %2 = vector.load %arg2[%c0_2, %c0_3, %c0_4] : memref<1x3x64xf32, #tpu.memory_space<vmem>>, vector<1x3x64xf32>
    %3 = vector.shape_cast %2 : vector<1x3x64xf32> to vector<3x64xf32>
    %cst = arith.constant dense<0.000000e+00> : vector<3x32xf32>
    %4 = tpu.matmul %3, %1, %cst {dimension_numbers = #tpu.dot_dimension_numbers<[1], [0], [0], [1], [0, 0, 1, 1], [], []>} : vector<3x64xf32>, vector<64x32xf32>, vector<3x32xf32> -> vector<3x32xf32>
    %cst_5 = arith.constant dense<0.000000e+00> : vector<3xf32>
    %5 = vector.multi_reduction <add>, %3, %cst_5 [1] : vector<3x64xf32> to vector<3xf32>
    %6 = vector.shape_cast %5 : vector<3xf32> to vector<3x1xf32>
    %cst_6 = arith.constant 9.99999974E-6 : f32
    %7 = vector.broadcast %cst_6 : f32 to vector<3x1xf32>
    %8 = arith.addf %6, %7 : vector<3x1xf32>
    %9 = vector.broadcast %8 : vector<3x1xf32> to vector<3x32xf32>
    %10 = arith.divf %4, %9 : vector<3x32xf32>
    %c0_7 = arith.constant 0 : index
    %c0_8 = arith.constant 0 : index
    %c0_9 = arith.constant 0 : index
    %11 = vector.load %arg3[%c0_7, %c0_8, %c0_9] : memref<1x3x32xf32, #tpu.memory_space<vmem>>, vector<1x3x32xf32>
    %12 = vector.shape_cast %11 : vector<1x3x32xf32> to vector<3x32xf32>
    %13 = vector.shape_cast %10 : vector<3x32xf32> to vector<1x3x32xf32>
    tpu.vector_store %arg3[%c0_7, %c0_8, %c0_9], %13 {strides = array<i32>} : memref<1x3x32xf32, #tpu.memory_space<vmem>>, vector<1x3x32xf32>,
    return
  }
  func.func @transform_0(%arg0: i32) -> (i32, i32, i32) {
    %c0_i32 = arith.constant 0 : i32
    %c0_i32_0 = arith.constant 0 : i32
    %c0_i32_1 = arith.constant 0 : i32
    return %arg0, %c0_i32, %c0_i32_0 : i32, i32, i32
  }
  func.func @transform_1(%arg0: i32) -> (i32, i32, i32) {
    %c0_i32 = arith.constant 0 : i32
    %c0_i32_0 = arith.constant 0 : i32
    %c0_i32_1 = arith.constant 0 : i32
    return %arg0, %c0_i32, %c0_i32_0 : i32, i32, i32
  }
  func.func @transform_2(%arg0: i32) -> (i32, i32, i32) {
    %c0_i32 = arith.constant 0 : i32
    %c0_i32_0 = arith.constant 0 : i32
    %c0_i32_1 = arith.constant 0 : i32
    return %arg0, %c0_i32, %c0_i32_0 : i32, i32, i32
  }
}

module attributes {stable_mosaic.version = 11 : i64} {
  func.func @_cosine_kernel(%arg0: i32, %arg1: i32, %arg2: memref<1x2x32xbf16, #tpu.memory_space<vmem>>, %arg3: memref<1x128x32xbf16, #tpu.memory_space<vmem>>, %arg4: memref<1x2x128xf32, #tpu.memory_space<vmem>>) attributes {dimension_semantics = [#tpu.dimension_semantics<parallel>, #tpu.dimension_semantics<parallel>], iteration_bounds = array<i64: 4, 1>, scalar_prefetch = 0 : i64, scratch_operands = 0 : i64, tpu.core_type = #tpu.core_type<tc>, window_params = [{transform_indices = @transform_0, window_bounds = array<i64: 1, 2, 32>}, {transform_indices = @transform_1, window_bounds = array<i64: 1, 128, 32>}, {transform_indices = @transform_2, window_bounds = array<i64: 1, 2, 128>}]} {
    %c0 = arith.constant 0 : index
    %c0_0 = arith.constant 0 : index
    %c0_1 = arith.constant 0 : index
    %0 = vector.load %arg2[%c0, %c0_0, %c0_1] : memref<1x2x32xbf16, #tpu.memory_space<vmem>>, vector<1x2x32xbf16>
    %1 = vector.shape_cast %0 : vector<1x2x32xbf16> to vector<2x32xbf16>
    %c0_2 = arith.constant 0 : index
    %c0_3 = arith.constant 0 : index
    %c0_4 = arith.constant 0 : index
    %2 = vector.load %arg3[%c0_2, %c0_3, %c0_4] : memref<1x128x32xbf16, #tpu.memory_space<vmem>>, vector<1x128x32xbf16>
    %3 = vector.shape_cast %2 : vector<1x128x32xbf16> to vector<128x32xbf16>
    %cst = arith.constant dense<0.000000e+00> : vector<2x128xf32>
    %4 = tpu.matmul %1, %3, %cst {dimension_numbers = #tpu.dot_dimension_numbers<[1], [1], [0], [0], [0, 0, 1, 0], [], []>} : vector<2x32xbf16>, vector<128x32xbf16>, vector<2x128xf32> -> vector<2x128xf32>
    %5 = arith.extf %3 : vector<128x32xbf16> to vector<128x32xf32>
    %cst_5 = arith.constant 1.000000e+00 : f32
    %6 = vector.broadcast %cst_5 : f32 to vector<1x32xf32>
    %7 = arith.mulf %5, %5 : vector<128x32xf32>
    %cst_6 = arith.constant dense<0.000000e+00> : vector<1x128xf32>
    %8 = tpu.matmul %6, %7, %cst_6 {dimension_numbers = #tpu.dot_dimension_numbers<[1], [1], [0], [0], [0, 0, 1, 0], [], []>} : vector<1x32xf32>, vector<128x32xf32>, vector<1x128xf32> -> vector<1x128xf32>
    %9 = arith.extf %1 : vector<2x32xbf16> to vector<2x32xf32>
    %10 = arith.mulf %9, %9 : vector<2x32xf32>
    %cst_7 = arith.constant dense<0.000000e+00> : vector<2xf32>
    %11 = vector.multi_reduction <add>, %10, %cst_7 [1] : vector<2x32xf32> to vector<2xf32>
    %12 = vector.shape_cast %11 : vector<2xf32> to vector<2x1xf32>
    %cst_8 = arith.constant 1.000000e-16 : f32
    %13 = vector.broadcast %cst_8 : f32 to vector<1x128xf32>
    %14 = arith.maximumf %8, %13 : vector<1x128xf32>
    %15 = math.rsqrt %14 : vector<1x128xf32>
    %cst_9 = arith.constant 1.000000e-16 : f32
    %16 = vector.broadcast %cst_9 : f32 to vector<2x1xf32>
    %17 = arith.maximumf %12, %16 : vector<2x1xf32>
    %18 = math.rsqrt %17 : vector<2x1xf32>
    %19 = vector.broadcast %15 : vector<1x128xf32> to vector<2x128xf32>
    %20 = vector.broadcast %18 : vector<2x1xf32> to vector<2x128xf32>
    %21 = arith.mulf %19, %20 : vector<2x128xf32>
    %22 = arith.mulf %4, %21 : vector<2x128xf32>
    %cst_10 = arith.constant 2.000000e+01 : f32
    %23 = vector.broadcast %cst_10 : f32 to vector<2x128xf32>
    %24 = arith.mulf %22, %23 : vector<2x128xf32>
    %c0_11 = arith.constant 0 : index
    %c0_12 = arith.constant 0 : index
    %c0_13 = arith.constant 0 : index
    %25 = vector.load %arg4[%c0_11, %c0_12, %c0_13] : memref<1x2x128xf32, #tpu.memory_space<vmem>>, vector<1x2x128xf32>
    %26 = vector.shape_cast %25 : vector<1x2x128xf32> to vector<2x128xf32>
    %27 = vector.shape_cast %24 : vector<2x128xf32> to vector<1x2x128xf32>
    tpu.vector_store %arg4[%c0_11, %c0_12, %c0_13], %27 {strides = array<i32>} : memref<1x2x128xf32, #tpu.memory_space<vmem>>, vector<1x2x128xf32>,
    return
  }
  func.func @transform_0(%arg0: i32, %arg1: i32) -> (i32, i32, i32) {
    %c0_i32 = arith.constant 0 : i32
    %c0_i32_0 = arith.constant 0 : i32
    %c0_i32_1 = arith.constant 0 : i32
    return %arg0, %c0_i32, %c0_i32_0 : i32, i32, i32
  }
  func.func @transform_1(%arg0: i32, %arg1: i32) -> (i32, i32, i32) {
    %c0_i32 = arith.constant 0 : i32
    %c0_i32_0 = arith.constant 0 : i32
    return %arg0, %arg1, %c0_i32 : i32, i32, i32
  }
  func.func @transform_2(%arg0: i32, %arg1: i32) -> (i32, i32, i32) {
    %c0_i32 = arith.constant 0 : i32
    %c0_i32_0 = arith.constant 0 : i32
    return %arg0, %c0_i32, %arg1 : i32, i32, i32
  }
}

module attributes {stable_mosaic.version = 11 : i64} {
  func.func @_ce_kernel(%arg0: i32, %arg1: i32, %arg2: memref<1x2x256xf32, #tpu.memory_space<vmem>>, %arg3: memref<1x1x256xf32, #tpu.memory_space<vmem>>, %arg4: memref<1x1x128xf32, #tpu.memory_space<vmem>>, %arg5: memref<1x1xf32, #tpu.memory_space<vmem>>) attributes {dimension_semantics = [#tpu.dimension_semantics<parallel>, #tpu.dimension_semantics<arbitrary>], iteration_bounds = array<i64: 4, 1>, scalar_prefetch = 0 : i64, scratch_operands = 1 : i64, tpu.core_type = #tpu.core_type<tc>, window_params = [{transform_indices = @transform_0, window_bounds = array<i64: 1, 2, 256>}, {transform_indices = @transform_1, window_bounds = array<i64: 1, 1, 256>}, {transform_indices = @transform_2, window_bounds = array<i64: 1, 1, 128>}]} {
    %c0_i32 = arith.constant 0 : i32
    %0 = arith.cmpi eq, %arg1, %c0_i32 : i32
    %1 = arith.extui %0 : i1 to i32
    %c0_i32_0 = arith.constant 0 : i32
    %2 = arith.cmpi ne, %1, %c0_i32_0 : i32
    scf.if %2 {
      %cst_14 = arith.constant 0.000000e+00 : f32
      %41 = vector.broadcast %cst_14 : f32 to vector<1x1xf32>
      %c0_15 = arith.constant 0 : index
      %c0_16 = arith.constant 0 : index
      %42 = vector.load %arg5[%c0_15, %c0_16] : memref<1x1xf32, #tpu.memory_space<vmem>>, vector<1x1xf32>
      tpu.vector_store %arg5[%c0_15, %c0_16], %41 {strides = array<i32>} : memref<1x1xf32, #tpu.memory_space<vmem>>, vector<1x1xf32>,
    } else {
    }
    %c0 = arith.constant 0 : index
    %c0_1 = arith.constant 0 : index
    %c0_2 = arith.constant 0 : index
    %3 = vector.load %arg2[%c0, %c0_1, %c0_2] : memref<1x2x256xf32, #tpu.memory_space<vmem>>, vector<1x2x256xf32>
    %4 = vector.shape_cast %3 : vector<1x2x256xf32> to vector<2x256xf32>
    %c0_3 = arith.constant 0 : index
    %c0_4 = arith.constant 0 : index
    %c0_5 = arith.constant 0 : index
    %5 = vector.load %arg3[%c0_3, %c0_4, %c0_5] : memref<1x1x256xf32, #tpu.memory_space<vmem>>, vector<1x1x256xf32>
    %6 = vector.shape_cast %5 : vector<1x1x256xf32> to vector<1x256xf32>
    %7 = vector.extract_strided_slice %4 {offsets = [0, 0], sizes = [1, 256], strides = [1, 1]} : vector<2x256xf32> to vector<1x256xf32>
    %8 = vector.extract_strided_slice %4 {offsets = [1, 0], sizes = [1, 256], strides = [1, 1]} : vector<2x256xf32> to vector<1x256xf32>
    %9 = arith.maximumf %7, %8 : vector<1x256xf32>
    %10 = arith.subf %7, %9 : vector<1x256xf32>
    %11 = math.exp %10 : vector<1x256xf32>
    %12 = arith.subf %8, %9 : vector<1x256xf32>
    %13 = math.exp %12 : vector<1x256xf32>
    %14 = arith.addf %11, %13 : vector<1x256xf32>
    %15 = math.log %14 : vector<1x256xf32>
    %16 = arith.addf %9, %15 : vector<1x256xf32>
    %cst = arith.constant 5.000000e-01 : f32
    %17 = vector.broadcast %cst : f32 to vector<1x256xf32>
    %18 = arith.cmpf ogt, %6, %17 : vector<1x256xf32>
    %19 = arith.select %18, %8, %7 : vector<1x256xi1>, vector<1x256xf32>
    %c256_i32 = arith.constant 256 : i32
    %20 = arith.muli %arg1, %c256_i32 : i32
    %21 = tpu.iota {dimensions = array<i32: 1>} : vector<1x256xi32>
    %22 = vector.broadcast %20 : i32 to vector<1x256xi32>
    %23 = arith.addi %22, %21 : vector<1x256xi32>
    %c256_i32_6 = arith.constant 256 : i32
    %24 = vector.broadcast %c256_i32_6 : i32 to vector<1x256xi32>
    %25 = arith.cmpi slt, %23, %24 : vector<1x256xi32>
    %26 = arith.extui %25 : vector<1x256xi1> to vector<1x256xi32>
    %27 = arith.sitofp %26 : vector<1x256xi32> to vector<1x256xf32>
    %c0_7 = arith.constant 0 : index
    %c0_8 = arith.constant 0 : index
    %28 = vector.load %arg5[%c0_7, %c0_8] : memref<1x1xf32, #tpu.memory_space<vmem>>, vector<1x1xf32>
    %29 = arith.subf %16, %19 : vector<1x256xf32>
    %30 = arith.mulf %29, %27 : vector<1x256xf32>
    %31 = vector.shape_cast %30 : vector<1x256xf32> to vector<1x1x256xf32>
    %cst_9 = arith.constant dense<0.000000e+00> : vector<1xf32>
    %32 = vector.multi_reduction <add>, %31, %cst_9 [1, 2] : vector<1x1x256xf32> to vector<1xf32>
    %33 = vector.shape_cast %32 : vector<1xf32> to vector<1x1x1xf32>
    %34 = vector.extract %33[0, 0, 0] : f32 from vector<1x1x1xf32>
    %35 = vector.broadcast %34 : f32 to vector<1x1xf32>
    %36 = arith.addf %28, %35 : vector<1x1xf32>
    %c0_10 = arith.constant 0 : index
    %c0_11 = arith.constant 0 : index
    %37 = vector.load %arg5[%c0_10, %c0_11] : memref<1x1xf32, #tpu.memory_space<vmem>>, vector<1x1xf32>
    tpu.vector_store %arg5[%c0_10, %c0_11], %36 {strides = array<i32>} : memref<1x1xf32, #tpu.memory_space<vmem>>, vector<1x1xf32>,
    %c0_i32_12 = arith.constant 0 : i32
    %38 = arith.cmpi eq, %arg1, %c0_i32_12 : i32
    %39 = arith.extui %38 : i1 to i32
    %c0_i32_13 = arith.constant 0 : i32
    %40 = arith.cmpi ne, %39, %c0_i32_13 : i32
    scf.if %40 {
      %c0_14 = arith.constant 0 : index
      %c0_15 = arith.constant 0 : index
      %41 = vector.load %arg5[%c0_14, %c0_15] : memref<1x1xf32, #tpu.memory_space<vmem>>, vector<1x1xf32>
      %cst_16 = arith.constant 2.560000e+02 : f32
      %42 = vector.broadcast %cst_16 : f32 to vector<1x1xf32>
      %43 = arith.divf %41, %42 : vector<1x1xf32>
      %44 = vector.shape_cast %43 : vector<1x1xf32> to vector<1x1xf32>
      %45 = vector.broadcast %44 : vector<1x1xf32> to vector<1x128xf32>
      %c0_17 = arith.constant 0 : index
      %c0_18 = arith.constant 0 : index
      %c0_19 = arith.constant 0 : index
      %46 = vector.load %arg4[%c0_17, %c0_18, %c0_19] : memref<1x1x128xf32, #tpu.memory_space<vmem>>, vector<1x1x128xf32>
      %47 = vector.shape_cast %46 : vector<1x1x128xf32> to vector<1x128xf32>
      %48 = vector.shape_cast %45 : vector<1x128xf32> to vector<1x1x128xf32>
      tpu.vector_store %arg4[%c0_17, %c0_18, %c0_19], %48 {strides = array<i32>} : memref<1x1x128xf32, #tpu.memory_space<vmem>>, vector<1x1x128xf32>,
    } else {
    }
    return
  }
  func.func @transform_0(%arg0: i32, %arg1: i32) -> (i32, i32, i32) {
    %c0_i32 = arith.constant 0 : i32
    %c0_i32_0 = arith.constant 0 : i32
    return %arg0, %c0_i32, %arg1 : i32, i32, i32
  }
  func.func @transform_1(%arg0: i32, %arg1: i32) -> (i32, i32, i32) {
    %c0_i32 = arith.constant 0 : i32
    %c0_i32_0 = arith.constant 0 : i32
    return %arg0, %c0_i32, %arg1 : i32, i32, i32
  }
  func.func @transform_2(%arg0: i32, %arg1: i32) -> (i32, i32, i32) {
    %c0_i32 = arith.constant 0 : i32
    %c0_i32_0 = arith.constant 0 : i32
    %c0_i32_1 = arith.constant 0 : i32
    return %arg0, %c0_i32, %c0_i32_0 : i32, i32, i32
  }
}

</mosaic_0001>

<llo_original>
// kernel: panet_forward.7
$region0: #{panet_forward.7}
  #allocation0 [shape = 'u32[]', space=smem, size = 0x4, offset = 0x4, fixed_abs, tag = 'smem constant byte address 0x4 - core index']
  #allocation1 [shape = 'u32[144,128]{1,0:T(1,128)}', space=vmem, size = 0x12000, scoped, tag = 'internal scratch']
  %s0 = inlined_call_operand.vmem [shape: f32[4,64,32], index: 0, kind: input, shape index: {}]
  %s1 = inlined_call_operand.vmem [shape: f32[4,2,64], index: 1, kind: input, shape index: {}]
  %s2 = inlined_call_operand.vmem [shape: f32[4,2,32], index: 2, kind: output, shape index: {}]
  %s3 = sld [smem:[#allocation0]]
  $region41: #{panet_forward.7} parent=0
    _
  %s5 = ssub.s32 1, %s3
  %s6 = scalar_select 0, %s5, %s3
  loop: start=0, step=1, limit=6
  $region2: #{panet_forward.7} parent=0 // loop_pre_header
    _
  $region3: #{panet_forward.7} parent=0 // loop_header
    %s8 = sphi 0, %s12
    %p9 = scmp.ge.s32.totalorder %s8, 6
    %s18 = sphi 0, %s20
    %s21 = sphi 0, %s18
    %s22 = sphi 0, %s21
    %s38 = sphi 0, %s22
    %s44 = sphi 0, %s46
    %s47 = sphi 0, %s44
    %s48 = sphi 0, %s47
    %s64 = sphi 0, %s48
    %s70 = sphi 0, %s72
    %s73 = sphi 0, %s70
    %s74 = sphi 0, %s73
    %s90 = sphi 0, %s74
  $region4: #{panet_forward.7} parent=0 // loop_header_branch
    %11 = sbr.rel (%p9) target = $region8
  $region5: #{panet_forward.7} parent=0 // loop_body
    %s13 = ssub.s32 %s8, 1
    %s14 = ssub.s32 %s8, 2
    %s15 = sadd.s32 %s8, 1
    %s16 = ssub.s32 %s8, %s15
    %p17 = scmp.eq.s32.totalorder %s16, 0
    %s19 = sadd.s32 %s18, 1
    %s20 = scalar_select %p17, %s18, %s19
    %p23 = pneg %p17
    %p24 = scmp.eq.s32.totalorder %s8, 3
    %p25 = por %p23, %p24
    %p26 = scmp.ne.s32.totalorder %s18, %s21
    %p27 = scmp.eq.s32.totalorder %s8, 0
    %p28 = por %p26, %p27
    %p29 = scmp.ne.s32.totalorder %s18, %s21
    %p30 = scmp.eq.s32.totalorder %s13, 3
    %p31 = por %p29, %p30
    %p32 = scmp.ne.s32.totalorder %s21, %s22
    %p33 = scmp.eq.s32.totalorder %s13, 0
    %p34 = por %p32, %p33
    %p35 = scmp.ne.s32.totalorder %s21, %s22
    %p36 = scmp.eq.s32.totalorder %s14, 3
    %p37 = por %p35, %p36
    %p39 = scmp.ne.s32.totalorder %s22, %s38
    %p40 = scmp.eq.s32.totalorder %s14, 0
    %p41 = por %p39, %p40
    %s42 = ssub.s32 %s8, %s15
    %p43 = scmp.eq.s32.totalorder %s42, 0
    %s45 = sadd.s32 %s44, 1
    %s46 = scalar_select %p43, %s44, %s45
    %p49 = pneg %p43
    %p50 = scmp.eq.s32.totalorder %s8, 3
    %p51 = por %p49, %p50
    %p52 = scmp.ne.s32.totalorder %s44, %s47
    %p53 = scmp.eq.s32.totalorder %s8, 0
    %p54 = por %p52, %p53
    %p55 = scmp.ne.s32.totalorder %s44, %s47
    %p56 = scmp.eq.s32.totalorder %s13, 3
    %p57 = por %p55, %p56
    %p58 = scmp.ne.s32.totalorder %s47, %s48
    %p59 = scmp.eq.s32.totalorder %s13, 0
    %p60 = por %p58, %p59
    %p61 = scmp.ne.s32.totalorder %s47, %s48
    %p62 = scmp.eq.s32.totalorder %s14, 3
    %p63 = por %p61, %p62
    %p65 = scmp.ne.s32.totalorder %s48, %s64
    %p66 = scmp.eq.s32.totalorder %s14, 0
    %p67 = por %p65, %p66
    %s68 = ssub.s32 %s8, %s15
    %p69 = scmp.eq.s32.totalorder %s68, 0
    %s71 = sadd.s32 %s70, 1
    %s72 = scalar_select %p69, %s70, %s71
    %p75 = pneg %p69
    %p76 = scmp.eq.s32.totalorder %s8, 3
    %p77 = por %p75, %p76
    %p78 = scmp.ne.s32.totalorder %s70, %s73
    %p79 = scmp.eq.s32.totalorder %s8, 0
    %p80 = por %p78, %p79
    %p81 = scmp.ne.s32.totalorder %s70, %s73
    %p82 = scmp.eq.s32.totalorder %s13, 3
    %p83 = por %p81, %p82
    %p84 = scmp.ne.s32.totalorder %s73, %s74
    %p85 = scmp.eq.s32.totalorder %s13, 0
    %p86 = por %p84, %p85
    %p87 = scmp.ne.s32.totalorder %s73, %s74
    %p88 = scmp.eq.s32.totalorder %s14, 3
    %p89 = por %p87, %p88
    %p91 = scmp.ne.s32.totalorder %s74, %s90
    %p92 = scmp.eq.s32.totalorder %s14, 0
    %p93 = por %p91, %p92
    %p94 = scmp.le.s32.totalorder 1, %s8
    %p95 = scmp.lt.s32.totalorder %s8, 5
    %p96 = pnand %p94, %p95
    %p97 = pneg %p96
    // Predicated region
    $region9: #{panet_forward.7} parent=5 // pred_check
      _
    $region10: #{panet_forward.7} parent=5 // pred_check_branch
      %99 = sbr.rel (%p96) target = $region12
    $region11: #{panet_forward.7} parent=5 // pred_region
      %s100 = ssub.s32 %s8, 1
    $region12: #{panet_forward.7} parent=5 // pred_fallthru
      _
    %p101 = scmp.lt.s32.totalorder %s8, 4
    // Predicated region
    $region13: #{panet_forward.7} parent=5 // pred_check
      %p102 = pneg %p101
    $region14: #{panet_forward.7} parent=5 // pred_check_branch
      %104 = sbr.rel (%p102) target = $region16
    $region15: #{panet_forward.7} parent=5 // pred_region
      // Predicated region
      $region17: #{panet_forward.7} parent=15 // pred_check
        %p105 = pneg %p28
      $region18: #{panet_forward.7} parent=15 // pred_check_branch
        %107 = sbr.rel (%p105) target = $region20
      $region19: #{panet_forward.7} parent=15 // pred_region
        %p108 = scmp.lt.s32.totalorder %s8, 3
        %s109 = scalar_select %p108, %s8, 3
        %s110 = smul.addr %s109, 8
        %s111 = smul.addr %s110, 8
        %s112 = scalar_lea.vmem %s0, %s111
      $region20: #{panet_forward.7} parent=15 // pred_fallthru
        _
      // Predicated region
      $region21: #{panet_forward.7} parent=15 // pred_check
        %p113 = pneg %p54
      $region22: #{panet_forward.7} parent=15 // pred_check_branch
        %115 = sbr.rel (%p113) target = $region24
      $region23: #{panet_forward.7} parent=15 // pred_region
        %p116 = scmp.lt.s32.totalorder %s8, 3
        %s117 = scalar_select %p116, %s8, 3
        %s118 = smul.addr %s117, 2
        %s119 = scalar_lea.vmem %s1, %s118
      $region24: #{panet_forward.7} parent=15 // pred_fallthru
        _
    $region16: #{panet_forward.7} parent=5 // pred_fallthru
      _
    %p120 = scmp.le.s32.totalorder 1, %s8
    %p121 = scmp.lt.s32.totalorder %s8, 5
    %p122 = pnand %p120, %p121
    %p123 = pneg %p122
    // Predicated region
    $region25: #{panet_forward.7} parent=5 // pred_check
      _
    $region26: #{panet_forward.7} parent=5 // pred_check_branch
      %125 = sbr.rel (%p122) target = $region28
    $region27: #{panet_forward.7} parent=5 // pred_region
      %s126 = ssub.s32 %s8, 1
      %p127 = scmp.lt.s32.totalorder %s13, 3
      %s128 = scalar_select %p127, %s13, 3
      %s129 = smul.addr %s128, 8
      %s130 = smul.addr %s129, 8
      %s131 = scalar_lea.vmem %s0, %s130
      %p132 = pneg %p34
      %p133 = pneg %p31
      %p134 = scmp.lt.s32.totalorder %s13, 3
      %s135 = scalar_select %p134, %s13, 3
      %s136 = smul.addr %s135, 2
      %s137 = scalar_lea.vmem %s1, %s136
      %p138 = pneg %p60
      %p139 = pneg %p57
      %p140 = pneg %p86
      %p141 = pneg %p83
      %p142 = scmp.lt.s32.totalorder %s13, 3
      %s143 = scalar_select %p142, %s13, 3
      %s144 = smul.addr %s143, 2
      %s145 = scalar_lea.vmem %s2, %s144
      %p146 = scmp.lt.s32.totalorder %s13, 3
      %s147 = scalar_select %p146, %s13, 3
      %s148 = smul.addr %s147, 8
      %s149 = smul.addr %s148, 8
      %s150 = scalar_lea.vmem %s0, %s149
      %p151 = scmp.lt.s32.totalorder %s13, 3
      %s152 = scalar_select %p151, %s13, 3
      %s153 = smul.addr %s152, 2
      %s154 = scalar_lea.vmem %s1, %s153
      %p155 = scmp.lt.s32.totalorder %s13, 3
      %s156 = scalar_select %p155, %s13, 3
      %s157 = smul.addr %s156, 2
      %s158 = scalar_lea.vmem %s2, %s157
      %v159 = vld [vmem:[%s150] sm:$0xff]
      %v160 = vld [vmem:[%s150 + $0x8] sm:$0xff]
      %v161 = vld [vmem:[%s150 + $0x10] sm:$0xff]
      %v162 = vld [vmem:[%s150 + $0x18] sm:$0xff]
      %v163 = vld [vmem:[%s150 + $0x20] sm:$0xff]
      %v164 = vld [vmem:[%s150 + $0x28] sm:$0xff]
      %v165 = vld [vmem:[%s150 + $0x30] sm:$0xff]
      %v166 = vld [vmem:[%s150 + $0x38] sm:$0xff]
      %v167 = vld [vmem:[%s154] sm:$0x3]
      %vm168 = vcmask 523264
      %v170 = vsel %vm168, %v167, 0
      %172 = vmatprep.subr.mxu0 0.0
      %173 = vmatpush1.msra.mxu0 %v159
      %174 = vmatprep.subr.mxu0 0.0
      %175 = vmatpush1.msra.mxu0 %v160
      %176 = vmatprep.subr.mxu0 0.0
      %177 = vmatpush1.msra.mxu0 %v161
      %178 = vmatprep.subr.mxu0 0.0
      %179 = vmatpush1.msra.mxu0 %v162
      %180 = vmatprep.subr.mxu0 0.0
      %181 = vmatpush1.msra.mxu0 %v163
      %182 = vmatprep.subr.mxu0 0.0
      %183 = vmatpush1.msra.mxu0 %v164
      %184 = vmatprep.subr.mxu0 0.0
      %185 = vmatpush1.msra.mxu0 %v165
      %186 = vmatprep.subr.mxu0 0.0
      %187 = vmatpush1.msra.mxu0 %v166
      %188 = vmatprep.subr.mxu0 0.0
      %189 = vmatpush1.msra.mxu0 0.0
      %190 = vmatprep.subr.mxu0 0.0
      %191 = vmatpush1.msra.mxu0 0.0
      %192 = vmatprep.subr.mxu0 0.0
      %193 = vmatpush1.msra.mxu0 0.0
      %194 = vmatprep.subr.mxu0 0.0
      %195 = vmatpush1.msra.mxu0 0.0
      %196 = vmatprep.subr.mxu0 0.0
      %197 = vmatpush1.msra.mxu0 0.0
      %198 = vmatprep.subr.mxu0 0.0
      %199 = vmatpush1.msra.mxu0 0.0
      %200 = vmatprep.subr.mxu0 0.0
      %201 = vmatpush1.msra.mxu0 0.0
      %202 = vmatprep.subr.mxu0 0.0
      %203 = vmatpush1.msra.mxu0 0.0
      %204 = vmatprep.subr.mxu0 0.0
      %205 = vmatpush1.msra.mxu0 0.0
      %206 = vmatprep.subr.mxu0 0.0
      %207 = vmatpush1.msra.mxu0 0.0
      %208 = vmatprep.subr.mxu0 0.0
      %209 = vmatpush1.msra.mxu0 0.0
      %210 = vmatprep.subr.mxu0 0.0
      %211 = vmatpush1.msra.mxu0 0.0
      %212 = vmatprep.subr.mxu0 0.0
      %213 = vmatpush1.msra.mxu0 0.0
      %214 = vmatprep.subr.mxu0 0.0
      %215 = vmatpush1.msra.mxu0 0.0
      %216 = vmatprep.subr.mxu0 0.0
      %217 = vmatpush1.msra.mxu0 0.0
      %218 = vmatprep.subr.mxu0 0.0
      %219 = vmatpush1.msra.mxu0 0.0
      %220 = vmatprep.subr.mxu0 0.0
      %221 = vmatpush1.msra.mxu0 0.0
      %222 = vmatprep.subr.mxu0 0.0
      %223 = vmatpush1.msra.mxu0 0.0
      %224 = vmatprep.subr.mxu0 0.0
      %225 = vmatpush1.msra.mxu0 0.0
      %226 = vmatprep.subr.mxu0 0.0
      %227 = vmatpush1.msra.mxu0 0.0
      %228 = vmatprep.subr.mxu0 0.0
      %229 = vmatpush1.msra.mxu0 0.0
      %230 = vmatprep.subr.mxu0 0.0
      %231 = vmatpush1.msra.mxu0 0.0
      %232 = vmatprep.subr.mxu0 0.0
      %233 = vmatpush1.msra.mxu0 0.0
      %234 = vmatprep.subr.mxu0 0.0
      %235 = vmatpush1.msra.mxu0 0.0
      %236 = vmatprep.mubr.f32.mxu0 0.0
      %237 = vmatmul.mubr.f32.gmra.mrb[0].mxu0 %v170
      %v238 = vpop.f32.mrb[0].mxu0
      %v239 = vadd.f32 0.0, %v238
      %v240 = vpop.f32.mrb[0].mxu0
      %241 = vdwg.mxu0
      %vm242 = vcmask 517120
      %v243 = vsel %vm242, %v167, 0.0
      %244 = vadd.xlane.f32.xlu0 %v243
      %v245 = vpop.xlane.xlu0 %244
      %v246 = vadd.f32 %v245, 1e-05
      %v247 = vrcp.pop %v246
      %v248 = vmul.f32 %v239, %v247
      %vm249 = vcmask 254976
      %250 = vst.msk [vmem:[%s158] sm:$0x3] %vm249, %v248
      %p251 = scmp.lt.s32.totalorder %s13, 3
      %s252 = scalar_select %p251, %s13, 3
      %s253 = smul.addr %s252, 2
      %s254 = scalar_lea.vmem %s2, %s253
      // Predicated region
      $region29: #{panet_forward.7} parent=27 // pred_check
        %p255 = pneg %p83
      $region30: #{panet_forward.7} parent=27 // pred_check_branch
        %257 = sbr.rel (%p255) target = $region32
      $region31: #{panet_forward.7} parent=27 // pred_region
        _
      $region32: #{panet_forward.7} parent=27 // pred_fallthru
        _
    $region28: #{panet_forward.7} parent=5 // pred_fallthru
      _
    %p258 = scmp.le.s32.totalorder 2, %s8
    // Predicated region
    $region33: #{panet_forward.7} parent=5 // pred_check
      %p259 = pneg %p258
    $region34: #{panet_forward.7} parent=5 // pred_check_branch
      %261 = sbr.rel (%p259) target = $region36
    $region35: #{panet_forward.7} parent=5 // pred_region
      %s262 = ssub.s32 %s8, 2
      // Predicated region
      $region37: #{panet_forward.7} parent=35 // pred_check
        %p263 = pneg %p89
      $region38: #{panet_forward.7} parent=35 // pred_check_branch
        %265 = sbr.rel (%p263) target = $region40
      $region39: #{panet_forward.7} parent=35 // pred_region
        %p266 = scmp.lt.s32.totalorder %s14, 3
        %s267 = scalar_select %p266, %s14, 3
        %s268 = smul.addr %s267, 2
        %s269 = scalar_lea.vmem %s2, %s268
      $region40: #{panet_forward.7} parent=35 // pred_fallthru
        _
    $region36: #{panet_forward.7} parent=5 // pred_fallthru
      _
  $region6: #{panet_forward.7} parent=0 // loop_footer
    %s12 = sadd.s32 1, %s8
  $region7: #{panet_forward.7} parent=0 // loop_footer_branch
    %7 = sbr.rel target = $region3
  $region8: #{panet_forward.7} parent=0 // loop_exit
    _

// kernel: panet_forward.6
$region0: #{panet_forward.6}
  #allocation0 [shape = 'u32[]', space=smem, size = 0x4, offset = 0x4, fixed_abs, tag = 'smem constant byte address 0x4 - core index']
  #allocation1 [shape = 'u32[144,128]{1,0:T(1,128)}', space=vmem, size = 0x12000, scoped, tag = 'internal scratch']
  %s0 = inlined_call_operand.vmem [shape: bf16[384,16], index: 0, kind: input, shape index: {}]
  %s1 = inlined_call_operand.vmem [shape: bf16[16,128], index: 1, kind: input, shape index: {}]
  %s2 = inlined_call_operand.vmem [shape: f32[1,128], index: 2, kind: input, shape index: {}]
  %s3 = inlined_call_operand.vmem [shape: f32[384,128], index: 3, kind: output, shape index: {}]
  %s4 = sld [smem:[#allocation0]]
  $region22: #{panet_forward.6} parent=0
    _
  %s6 = ssub.s32 1, %s4
  %s7 = scalar_select 0, %s6, %s4
  // Predicated region
  $region2: #{panet_forward.6} parent=0 // pred_check
    _
  $region3: #{panet_forward.6} parent=0 // pred_check_branch
    %9 = sbr.rel (0) target = $region5
  $region4: #{panet_forward.6} parent=0 // pred_region
    _
  $region5: #{panet_forward.6} parent=0 // pred_fallthru
    _
  // Predicated region
  $region6: #{panet_forward.6} parent=0 // pred_check
    _
  $region7: #{panet_forward.6} parent=0 // pred_check_branch
    %11 = sbr.rel (0) target = $region9
  $region8: #{panet_forward.6} parent=0 // pred_region
    _
  $region9: #{panet_forward.6} parent=0 // pred_fallthru
    _
  // Predicated region
  $region10: #{panet_forward.6} parent=0 // pred_check
    _
  $region11: #{panet_forward.6} parent=0 // pred_check_branch
    %13 = sbr.rel (0) target = $region13
  $region12: #{panet_forward.6} parent=0 // pred_region
    _
  $region13: #{panet_forward.6} parent=0 // pred_fallthru
    _
  %v15 = vld [vmem:[%s0] sm:$0xf]
  %v16 = vld [vmem:[%s0 + $0x4] sm:$0xf]
  %v17 = vld [vmem:[%s0 + $0x8] sm:$0xf]
  %v18 = vld [vmem:[%s0 + $0xc] sm:$0xf]
  %v19 = vld [vmem:[%s0 + $0x10] sm:$0xf]
  %v20 = vld [vmem:[%s0 + $0x14] sm:$0xf]
  %v21 = vld [vmem:[%s0 + $0x18] sm:$0xf]
  %v22 = vld [vmem:[%s0 + $0x1c] sm:$0xf]
  %v23 = vld [vmem:[%s0 + $0x20] sm:$0xf]
  %v24 = vld [vmem:[%s0 + $0x24] sm:$0xf]
  %v25 = vld [vmem:[%s0 + $0x28] sm:$0xf]
  %v26 = vld [vmem:[%s0 + $0x2c] sm:$0xf]
  %v27 = vld [vmem:[%s0 + $0x30] sm:$0xf]
  %v28 = vld [vmem:[%s0 + $0x34] sm:$0xf]
  %v29 = vld [vmem:[%s0 + $0x38] sm:$0xf]
  %v30 = vld [vmem:[%s0 + $0x3c] sm:$0xf]
  %v31 = vld [vmem:[%s0 + $0x40] sm:$0xf]
  %v32 = vld [vmem:[%s0 + $0x44] sm:$0xf]
  %v33 = vld [vmem:[%s0 + $0x48] sm:$0xf]
  %v34 = vld [vmem:[%s0 + $0x4c] sm:$0xf]
  %v35 = vld [vmem:[%s0 + $0x50] sm:$0xf]
  %v36 = vld [vmem:[%s0 + $0x54] sm:$0xf]
  %v37 = vld [vmem:[%s0 + $0x58] sm:$0xf]
  %v38 = vld [vmem:[%s0 + $0x5c] sm:$0xf]
  %v39 = vld [vmem:[%s0 + $0x60] sm:$0xf]
  %v40 = vld [vmem:[%s0 + $0x64] sm:$0xf]
  %v41 = vld [vmem:[%s0 + $0x68] sm:$0xf]
  %v42 = vld [vmem:[%s0 + $0x6c] sm:$0xf]
  %v43 = vld [vmem:[%s0 + $0x70] sm:$0xf]
  %v44 = vld [vmem:[%s0 + $0x74] sm:$0xf]
  %v45 = vld [vmem:[%s0 + $0x78] sm:$0xf]
  %v46 = vld [vmem:[%s0 + $0x7c] sm:$0xf]
  %v47 = vld [vmem:[%s0 + $0x80] sm:$0xf]
  %v48 = vld [vmem:[%s0 + $0x84] sm:$0xf]
  %v49 = vld [vmem:[%s0 + $0x88] sm:$0xf]
  %v50 = vld [vmem:[%s0 + $0x8c] sm:$0xf]
  %v51 = vld [vmem:[%s0 + $0x90] sm:$0xf]
  %v52 = vld [vmem:[%s0 + $0x94] sm:$0xf]
  %v53 = vld [vmem:[%s0 + $0x98] sm:$0xf]
  %v54 = vld [vmem:[%s0 + $0x9c] sm:$0xf]
  %v55 = vld [vmem:[%s0 + $0xa0] sm:$0xf]
  %v56 = vld [vmem:[%s0 + $0xa4] sm:$0xf]
  %v57 = vld [vmem:[%s0 + $0xa8] sm:$0xf]
  %v58 = vld [vmem:[%s0 + $0xac] sm:$0xf]
  %v59 = vld [vmem:[%s0 + $0xb0] sm:$0xf]
  %v60 = vld [vmem:[%s0 + $0xb4] sm:$0xf]
  %v61 = vld [vmem:[%s0 + $0xb8] sm:$0xf]
  %v62 = vld [vmem:[%s0 + $0xbc] sm:$0xf]
  %v63 = vld [vmem:[%s1] sm:$0xf]
  %v64 = vld [vmem:[%s1 + $0x4] sm:$0xf]
  %v65 = vld [vmem:[%s2] sm:$0x1]
  %v67 = vlaneseq
  %v68 = vshrl.u32 %v67, 7
  %v69 = vsub.s32 0, %v68
  %v70 = vrot.slane %v65, %v69
  %v120 = vunpack.c.l.b16 %v15
  %v121 = vunpack.c.l.b16 %v16
  %v122 = vunpack.c.l.b16 %v17
  %v123 = vunpack.c.l.b16 %v18
  %v124 = vunpack.c.l.b16 %v19
  %v125 = vunpack.c.l.b16 %v20
  %v126 = vunpack.c.l.b16 %v21
  %v127 = vunpack.c.l.b16 %v22
  %v128 = vunpack.c.l.b16 %v23
  %v129 = vunpack.c.l.b16 %v24
  %v130 = vunpack.c.l.b16 %v25
  %v131 = vunpack.c.l.b16 %v26
  %v132 = vunpack.c.l.b16 %v27
  %v133 = vunpack.c.l.b16 %v28
  %v134 = vunpack.c.l.b16 %v29
  %v135 = vunpack.c.l.b16 %v30
  %v136 = vunpack.c.l.b16 %v31
  %v137 = vunpack.c.l.b16 %v32
  %v138 = vunpack.c.l.b16 %v33
  %v139 = vunpack.c.l.b16 %v34
  %v140 = vunpack.c.l.b16 %v35
  %v141 = vunpack.c.l.b16 %v36
  %v142 = vunpack.c.l.b16 %v37
  %v143 = vunpack.c.l.b16 %v38
  %v144 = vunpack.c.l.b16 %v39
  %v145 = vunpack.c.l.b16 %v40
  %v146 = vunpack.c.l.b16 %v41
  %v147 = vunpack.c.l.b16 %v42
  %v148 = vunpack.c.l.b16 %v43
  %v149 = vunpack.c.l.b16 %v44
  %v150 = vunpack.c.l.b16 %v45
  %v151 = vunpack.c.l.b16 %v46
  %v152 = vunpack.c.l.b16 %v47
  %v153 = vunpack.c.l.b16 %v48
  %v154 = vunpack.c.l.b16 %v49
  %v155 = vunpack.c.l.b16 %v50
  %v156 = vunpack.c.l.b16 %v51
  %v157 = vunpack.c.l.b16 %v52
  %v158 = vunpack.c.l.b16 %v53
  %v159 = vunpack.c.l.b16 %v54
  %v160 = vunpack.c.l.b16 %v55
  %v161 = vunpack.c.l.b16 %v56
  %v162 = vunpack.c.l.b16 %v57
  %v163 = vunpack.c.l.b16 %v58
  %v164 = vunpack.c.l.b16 %v59
  %v165 = vunpack.c.l.b16 %v60
  %v166 = vunpack.c.l.b16 %v61
  %v167 = vunpack.c.l.b16 %v62
  %v168 = vpack.c.b16 %v121, %v120
  %v169 = vpack.c.b16 %v123, %v122
  %v170 = vpack.c.b16 %v125, %v124
  %v171 = vpack.c.b16 %v127, %v126
  %v172 = vpack.c.b16 %v129, %v128
  %v173 = vpack.c.b16 %v131, %v130
  %v174 = vpack.c.b16 %v133, %v132
  %v175 = vpack.c.b16 %v135, %v134
  %v176 = vpack.c.b16 %v137, %v136
  %v177 = vpack.c.b16 %v139, %v138
  %v178 = vpack.c.b16 %v141, %v140
  %v179 = vpack.c.b16 %v143, %v142
  %v180 = vpack.c.b16 %v145, %v144
  %v181 = vpack.c.b16 %v147, %v146
  %v182 = vpack.c.b16 %v149, %v148
  %v183 = vpack.c.b16 %v151, %v150
  %v184 = vpack.c.b16 %v153, %v152
  %v185 = vpack.c.b16 %v155, %v154
  %v186 = vpack.c.b16 %v157, %v156
  %v187 = vpack.c.b16 %v159, %v158
  %v188 = vpack.c.b16 %v161, %v160
  %v189 = vpack.c.b16 %v163, %v162
  %v190 = vpack.c.b16 %v165, %v164
  %v191 = vpack.c.b16 %v167, %v166
  %v194 = vunpack.c.l.b16 %v63
  %v195 = vunpack.c.l.b16 %v64
  %v196 = vpack.c.b16 %v195, %v194
  %vm198 = vcmask 130048
  %v200 = vsel %vm198, %v168, 0
  %v203 = vsel %vm198, %v169, 0
  %v206 = vsel %vm198, %v170, 0
  %v209 = vsel %vm198, %v171, 0
  %v212 = vsel %vm198, %v172, 0
  %v215 = vsel %vm198, %v173, 0
  %v218 = vsel %vm198, %v174, 0
  %v221 = vsel %vm198, %v175, 0
  %v224 = vsel %vm198, %v176, 0
  %v227 = vsel %vm198, %v177, 0
  %v230 = vsel %vm198, %v178, 0
  %v233 = vsel %vm198, %v179, 0
  %v236 = vsel %vm198, %v180, 0
  %v239 = vsel %vm198, %v181, 0
  %v242 = vsel %vm198, %v182, 0
  %v245 = vsel %vm198, %v183, 0
  %v248 = vsel %vm198, %v184, 0
  %v251 = vsel %vm198, %v185, 0
  %v254 = vsel %vm198, %v186, 0
  %v257 = vsel %vm198, %v187, 0
  %v260 = vsel %vm198, %v188, 0
  %v263 = vsel %vm198, %v189, 0
  %v266 = vsel %vm198, %v190, 0
  %v269 = vsel %vm198, %v191, 0
  %271 = vmatprep.subr.bf16.mxu0 0
  %272 = vmatpush1.bf16.msra.mxu0 %v196
  %273 = vmatprep.subr.bf16.mxu0 0
  %274 = vmatpush1.bf16.msra.mxu0 0
  %275 = vmatprep.subr.bf16.mxu0 0
  %276 = vmatpush1.bf16.msra.mxu0 0
  %277 = vmatprep.subr.bf16.mxu0 0
  %278 = vmatpush1.bf16.msra.mxu0 0
  %279 = vmatprep.subr.bf16.mxu0 0
  %280 = vmatpush1.bf16.msra.mxu0 0
  %281 = vmatprep.subr.bf16.mxu0 0
  %282 = vmatpush1.bf16.msra.mxu0 0
  %283 = vmatprep.subr.bf16.mxu0 0
  %284 = vmatpush1.bf16.msra.mxu0 0
  %285 = vmatprep.subr.bf16.mxu0 0
  %286 = vmatpush1.bf16.msra.mxu0 0
  %287 = vmatprep.subr.bf16.mxu0 0
  %288 = vmatpush1.bf16.msra.mxu0 0
  %289 = vmatprep.subr.bf16.mxu0 0
  %290 = vmatpush1.bf16.msra.mxu0 0
  %291 = vmatprep.subr.bf16.mxu0 0
  %292 = vmatpush1.bf16.msra.mxu0 0
  %293 = vmatprep.subr.bf16.mxu0 0
  %294 = vmatpush1.bf16.msra.mxu0 0
  %295 = vmatprep.subr.bf16.mxu0 0
  %296 = vmatpush1.bf16.msra.mxu0 0
  %297 = vmatprep.subr.bf16.mxu0 0
  %298 = vmatpush1.bf16.msra.mxu0 0
  %299 = vmatprep.subr.bf16.mxu0 0
  %300 = vmatpush1.bf16.msra.mxu0 0
  %301 = vmatprep.subr.bf16.mxu0 0
  %302 = vmatpush1.bf16.msra.mxu0 0
  %303 = vmatprep.mubr.bf16.mxu0 0
  %304 = vmatmul.mubr.bf16.gmra.mrb[0].mxu0 %v200
  %v305 = vpop.f32.mrb[0].mxu0
  %v306 = vadd.f32 %v70, %v305
  %v307 = vpop.f32.mrb[0].mxu0
  %v308 = vpop.f32.mrb[0].mxu0
  %v309 = vadd.f32 %v70, %v308
  %v310 = vpop.f32.mrb[0].mxu0
  %311 = vmatprep.mubr.bf16.mxu0 0
  %312 = vmatmul.mubr.bf16.gmra.mrb[0].mxu0 %v203
  %v313 = vpop.f32.mrb[0].mxu0
  %v314 = vadd.f32 %v70, %v313
  %v315 = vpop.f32.mrb[0].mxu0
  %v316 = vpop.f32.mrb[0].mxu0
  %v317 = vadd.f32 %v70, %v316
  %v318 = vpop.f32.mrb[0].mxu0
  %319 = vmatprep.mubr.bf16.mxu0 0
  %320 = vmatmul.mubr.bf16.gmra.mrb[0].mxu0 %v206
  %v321 = vpop.f32.mrb[0].mxu0
  %v322 = vadd.f32 %v70, %v321
  %v323 = vpop.f32.mrb[0].mxu0
  %v324 = vpop.f32.mrb[0].mxu0
  %v325 = vadd.f32 %v70, %v324
  %v326 = vpop.f32.mrb[0].mxu0
  %327 = vmatprep.mubr.bf16.mxu0 0
  %328 = vmatmul.mubr.bf16.gmra.mrb[0].mxu0 %v209
  %v329 = vpop.f32.mrb[0].mxu0
  %v330 = vadd.f32 %v70, %v329
  %v331 = vpop.f32.mrb[0].mxu0
  %v332 = vpop.f32.mrb[0].mxu0
  %v333 = vadd.f32 %v70, %v332
  %v334 = vpop.f32.mrb[0].mxu0
  %335 = vmatprep.mubr.bf16.mxu0 0
  %336 = vmatmul.mubr.bf16.gmra.mrb[0].mxu0 %v212
  %v337 = vpop.f32.mrb[0].mxu0
  %v338 = vadd.f32 %v70, %v337
  %v339 = vpop.f32.mrb[0].mxu0
  %v340 = vpop.f32.mrb[0].mxu0
  %v341 = vadd.f32 %v70, %v340
  %v342 = vpop.f32.mrb[0].mxu0
  %343 = vmatprep.mubr.bf16.mxu0 0
  %344 = vmatmul.mubr.bf16.gmra.mrb[0].mxu0 %v215
  %v345 = vpop.f32.mrb[0].mxu0
  %v346 = vadd.f32 %v70, %v345
  %v347 = vpop.f32.mrb[0].mxu0
  %v348 = vpop.f32.mrb[0].mxu0
  %v349 = vadd.f32 %v70, %v348
  %v350 = vpop.f32.mrb[0].mxu0
  %351 = vmatprep.mubr.bf16.mxu0 0
  %352 = vmatmul.mubr.bf16.gmra.mrb[0].mxu0 %v218
  %v353 = vpop.f32.mrb[0].mxu0
  %v354 = vadd.f32 %v70, %v353
  %v355 = vpop.f32.mrb[0].mxu0
  %v356 = vpop.f32.mrb[0].mxu0
  %v357 = vadd.f32 %v70, %v356
  %v358 = vpop.f32.mrb[0].mxu0
  %359 = vmatprep.mubr.bf16.mxu0 0
  %360 = vmatmul.mubr.bf16.gmra.mrb[0].mxu0 %v221
  %v361 = vpop.f32.mrb[0].mxu0
  %v362 = vadd.f32 %v70, %v361
  %v363 = vpop.f32.mrb[0].mxu0
  %v364 = vpop.f32.mrb[0].mxu0
  %v365 = vadd.f32 %v70, %v364
  %v366 = vpop.f32.mrb[0].mxu0
  %367 = vmatprep.mubr.bf16.mxu0 0
  %368 = vmatmul.mubr.bf16.gmra.mrb[0].mxu0 %v224
  %v369 = vpop.f32.mrb[0].mxu0
  %v370 = vadd.f32 %v70, %v369
  %v371 = vpop.f32.mrb[0].mxu0
  %v372 = vpop.f32.mrb[0].mxu0
  %v373 = vadd.f32 %v70, %v372
  %v374 = vpop.f32.mrb[0].mxu0
  %375 = vmatprep.mubr.bf16.mxu0 0
  %376 = vmatmul.mubr.bf16.gmra.mrb[0].mxu0 %v227
  %v377 = vpop.f32.mrb[0].mxu0
  %v378 = vadd.f32 %v70, %v377
  %v379 = vpop.f32.mrb[0].mxu0
  %v380 = vpop.f32.mrb[0].mxu0
  %v381 = vadd.f32 %v70, %v380
  %v382 = vpop.f32.mrb[0].mxu0
  %383 = vmatprep.mubr.bf16.mxu0 0
  %384 = vmatmul.mubr.bf16.gmra.mrb[0].mxu0 %v230
  %v385 = vpop.f32.mrb[0].mxu0
  %v386 = vadd.f32 %v70, %v385
  %v387 = vpop.f32.mrb[0].mxu0
  %v388 = vpop.f32.mrb[0].mxu0
  %v389 = vadd.f32 %v70, %v388
  %v390 = vpop.f32.mrb[0].mxu0
  %391 = vmatprep.mubr.bf16.mxu0 0
  %392 = vmatmul.mubr.bf16.gmra.mrb[0].mxu0 %v233
  %v393 = vpop.f32.mrb[0].mxu0
  %v394 = vadd.f32 %v70, %v393
  %v395 = vpop.f32.mrb[0].mxu0
  %v396 = vpop.f32.mrb[0].mxu0
  %v397 = vadd.f32 %v70, %v396
  %v398 = vpop.f32.mrb[0].mxu0
  %399 = vmatprep.mubr.bf16.mxu0 0
  %400 = vmatmul.mubr.bf16.gmra.mrb[0].mxu0 %v236
  %v401 = vpop.f32.mrb[0].mxu0
  %v402 = vadd.f32 %v70, %v401
  %v403 = vpop.f32.mrb[0].mxu0
  %v404 = vpop.f32.mrb[0].mxu0
  %v405 = vadd.f32 %v70, %v404
  %v406 = vpop.f32.mrb[0].mxu0
  %407 = vmatprep.mubr.bf16.mxu0 0
  %408 = vmatmul.mubr.bf16.gmra.mrb[0].mxu0 %v239
  %v409 = vpop.f32.mrb[0].mxu0
  %v410 = vadd.f32 %v70, %v409
  %v411 = vpop.f32.mrb[0].mxu0
  %v412 = vpop.f32.mrb[0].mxu0
  %v413 = vadd.f32 %v70, %v412
  %v414 = vpop.f32.mrb[0].mxu0
  %415 = vmatprep.mubr.bf16.mxu0 0
  %416 = vmatmul.mubr.bf16.gmra.mrb[0].mxu0 %v242
  %v417 = vpop.f32.mrb[0].mxu0
  %v418 = vadd.f32 %v70, %v417
  %v419 = vpop.f32.mrb[0].mxu0
  %v420 = vpop.f32.mrb[0].mxu0
  %v421 = vadd.f32 %v70, %v420
  %v422 = vpop.f32.mrb[0].mxu0
  %423 = vmatprep.mubr.bf16.mxu0 0
  %424 = vmatmul.mubr.bf16.gmra.mrb[0].mxu0 %v245
  %v425 = vpop.f32.mrb[0].mxu0
  %v426 = vadd.f32 %v70, %v425
  %v427 = vpop.f32.mrb[0].mxu0
  %v428 = vpop.f32.mrb[0].mxu0
  %v429 = vadd.f32 %v70, %v428
  %v430 = vpop.f32.mrb[0].mxu0
  %431 = vmatprep.mubr.bf16.mxu0 0
  %432 = vmatmul.mubr.bf16.gmra.mrb[0].mxu0 %v248
  %v433 = vpop.f32.mrb[0].mxu0
  %v434 = vadd.f32 %v70, %v433
  %v435 = vpop.f32.mrb[0].mxu0
  %v436 = vpop.f32.mrb[0].mxu0
  %v437 = vadd.f32 %v70, %v436
  %v438 = vpop.f32.mrb[0].mxu0
  %439 = vmatprep.mubr.bf16.mxu0 0
  %440 = vmatmul.mubr.bf16.gmra.mrb[0].mxu0 %v251
  %v441 = vpop.f32.mrb[0].mxu0
  %v442 = vadd.f32 %v70, %v441
  %v443 = vpop.f32.mrb[0].mxu0
  %v444 = vpop.f32.mrb[0].mxu0
  %v445 = vadd.f32 %v70, %v444
  %v446 = vpop.f32.mrb[0].mxu0
  %447 = vmatprep.mubr.bf16.mxu0 0
  %448 = vmatmul.mubr.bf16.gmra.mrb[0].mxu0 %v254
  %v449 = vpop.f32.mrb[0].mxu0
  %v450 = vadd.f32 %v70, %v449
  %v451 = vpop.f32.mrb[0].mxu0
  %v452 = vpop.f32.mrb[0].mxu0
  %v453 = vadd.f32 %v70, %v452
  %v454 = vpop.f32.mrb[0].mxu0
  %455 = vmatprep.mubr.bf16.mxu0 0
  %456 = vmatmul.mubr.bf16.gmra.mrb[0].mxu0 %v257
  %v457 = vpop.f32.mrb[0].mxu0
  %v458 = vadd.f32 %v70, %v457
  %v459 = vpop.f32.mrb[0].mxu0
  %v460 = vpop.f32.mrb[0].mxu0
  %v461 = vadd.f32 %v70, %v460
  %v462 = vpop.f32.mrb[0].mxu0
  %463 = vmatprep.mubr.bf16.mxu0 0
  %464 = vmatmul.mubr.bf16.gmra.mrb[0].mxu0 %v260
  %v465 = vpop.f32.mrb[0].mxu0
  %v466 = vadd.f32 %v70, %v465
  %v467 = vpop.f32.mrb[0].mxu0
  %v468 = vpop.f32.mrb[0].mxu0
  %v469 = vadd.f32 %v70, %v468
  %v470 = vpop.f32.mrb[0].mxu0
  %471 = vmatprep.mubr.bf16.mxu0 0
  %472 = vmatmul.mubr.bf16.gmra.mrb[0].mxu0 %v263
  %v473 = vpop.f32.mrb[0].mxu0
  %v474 = vadd.f32 %v70, %v473
  %v475 = vpop.f32.mrb[0].mxu0
  %v476 = vpop.f32.mrb[0].mxu0
  %v477 = vadd.f32 %v70, %v476
  %v478 = vpop.f32.mrb[0].mxu0
  %479 = vmatprep.mubr.bf16.mxu0 0
  %480 = vmatmul.mubr.bf16.gmra.mrb[0].mxu0 %v266
  %v481 = vpop.f32.mrb[0].mxu0
  %v482 = vadd.f32 %v70, %v481
  %v483 = vpop.f32.mrb[0].mxu0
  %v484 = vpop.f32.mrb[0].mxu0
  %v485 = vadd.f32 %v70, %v484
  %v486 = vpop.f32.mrb[0].mxu0
  %487 = vmatprep.mubr.bf16.mxu0 0
  %488 = vmatmul.mubr.bf16.gmra.mrb[0].mxu0 %v269
  %v489 = vpop.f32.mrb[0].mxu0
  %v490 = vadd.f32 %v70, %v489
  %v491 = vpop.f32.mrb[0].mxu0
  %v492 = vpop.f32.mrb[0].mxu0
  %v493 = vadd.f32 %v70, %v492
  %v494 = vpop.f32.mrb[0].mxu0
  %495 = vdwg.mxu0
  %496 = vst [vmem:[%s3] sm:$0xff] %v306
  %497 = vst [vmem:[%s3 + $0x8] sm:$0xff] %v309
  %498 = vst [vmem:[%s3 + $0x10] sm:$0xff] %v314
  %499 = vst [vmem:[%s3 + $0x18] sm:$0xff] %v317
  %500 = vst [vmem:[%s3 + $0x20] sm:$0xff] %v322
  %501 = vst [vmem:[%s3 + $0x28] sm:$0xff] %v325
  %502 = vst [vmem:[%s3 + $0x30] sm:$0xff] %v330
  %503 = vst [vmem:[%s3 + $0x38] sm:$0xff] %v333
  %504 = vst [vmem:[%s3 + $0x40] sm:$0xff] %v338
  %505 = vst [vmem:[%s3 + $0x48] sm:$0xff] %v341
  %506 = vst [vmem:[%s3 + $0x50] sm:$0xff] %v346
  %507 = vst [vmem:[%s3 + $0x58] sm:$0xff] %v349
  %508 = vst [vmem:[%s3 + $0x60] sm:$0xff] %v354
  %509 = vst [vmem:[%s3 + $0x68] sm:$0xff] %v357
  %510 = vst [vmem:[%s3 + $0x70] sm:$0xff] %v362
  %511 = vst [vmem:[%s3 + $0x78] sm:$0xff] %v365
  %512 = vst [vmem:[%s3 + $0x80] sm:$0xff] %v370
  %513 = vst [vmem:[%s3 + $0x88] sm:$0xff] %v373
  %514 = vst [vmem:[%s3 + $0x90] sm:$0xff] %v378
  %515 = vst [vmem:[%s3 + $0x98] sm:$0xff] %v381
  %516 = vst [vmem:[%s3 + $0xa0] sm:$0xff] %v386
  %517 = vst [vmem:[%s3 + $0xa8] sm:$0xff] %v389
  %518 = vst [vmem:[%s3 + $0xb0] sm:$0xff] %v394
  %519 = vst [vmem:[%s3 + $0xb8] sm:$0xff] %v397
  %520 = vst [vmem:[%s3 + $0xc0] sm:$0xff] %v402
  %521 = vst [vmem:[%s3 + $0xc8] sm:$0xff] %v405
  %522 = vst [vmem:[%s3 + $0xd0] sm:$0xff] %v410
  %523 = vst [vmem:[%s3 + $0xd8] sm:$0xff] %v413
  %524 = vst [vmem:[%s3 + $0xe0] sm:$0xff] %v418
  %525 = vst [vmem:[%s3 + $0xe8] sm:$0xff] %v421
  %526 = vst [vmem:[%s3 + $0xf0] sm:$0xff] %v426
  %527 = vst [vmem:[%s3 + $0xf8] sm:$0xff] %v429
  %528 = vst [vmem:[%s3 + $0x100] sm:$0xff] %v434
  %529 = vst [vmem:[%s3 + $0x108] sm:$0xff] %v437
  %530 = vst [vmem:[%s3 + $0x110] sm:$0xff] %v442
  %531 = vst [vmem:[%s3 + $0x118] sm:$0xff] %v445
  %532 = vst [vmem:[%s3 + $0x120] sm:$0xff] %v450
  %533 = vst [vmem:[%s3 + $0x128] sm:$0xff] %v453
  %534 = vst [vmem:[%s3 + $0x130] sm:$0xff] %v458
  %535 = vst [vmem:[%s3 + $0x138] sm:$0xff] %v461
  %536 = vst [vmem:[%s3 + $0x140] sm:$0xff] %v466
  %537 = vst [vmem:[%s3 + $0x148] sm:$0xff] %v469
  %538 = vst [vmem:[%s3 + $0x150] sm:$0xff] %v474
  %539 = vst [vmem:[%s3 + $0x158] sm:$0xff] %v477
  %540 = vst [vmem:[%s3 + $0x160] sm:$0xff] %v482
  %541 = vst [vmem:[%s3 + $0x168] sm:$0xff] %v485
  %542 = vst [vmem:[%s3 + $0x170] sm:$0xff] %v490
  %543 = vst [vmem:[%s3 + $0x178] sm:$0xff] %v493
  // Predicated region
  $region14: #{panet_forward.6} parent=0 // pred_check
    _
  $region15: #{panet_forward.6} parent=0 // pred_check_branch
    %545 = sbr.rel (0) target = $region17
  $region16: #{panet_forward.6} parent=0 // pred_region
    _
  $region17: #{panet_forward.6} parent=0 // pred_fallthru
    _
  // Predicated region
  $region18: #{panet_forward.6} parent=0 // pred_check
    _
  $region19: #{panet_forward.6} parent=0 // pred_check_branch
    %547 = sbr.rel (0) target = $region21
  $region20: #{panet_forward.6} parent=0 // pred_region
    _
  $region21: #{panet_forward.6} parent=0 // pred_fallthru
    _

// kernel: panet_forward.8
$region0: #{panet_forward.8}
  #allocation0 [shape = 'u32[]', space=smem, size = 0x4, offset = 0x4, fixed_abs, tag = 'smem constant byte address 0x4 - core index']
  #allocation1 [shape = 'u32[144,128]{1,0:T(1,128)}', space=vmem, size = 0x12000, scoped, tag = 'internal scratch']
  %s0 = inlined_call_operand.vmem [shape: bf16[2,3,32], index: 0, kind: input, shape index: {}]
  %s1 = inlined_call_operand.vmem [shape: bf16[2,128,32], index: 1, kind: input, shape index: {}]
  %s2 = inlined_call_operand.vmem [shape: f32[2,3,128], index: 2, kind: output, shape index: {}]
  %s3 = sld [smem:[#allocation0]]
  $region41: #{panet_forward.8} parent=0
    _
  %s5 = ssub.s32 1, %s3
  %s6 = scalar_select 0, %s5, %s3
  loop: start=0, step=1, limit=4
  $region2: #{panet_forward.8} parent=0 // loop_pre_header
    _
  $region3: #{panet_forward.8} parent=0 // loop_header
    %s8 = sphi 0, %s12
    %p9 = scmp.ge.s32.totalorder %s8, 4
    %s15 = sphi 0, %s27
    %s16 = sphi 0, %s23
    %s17 = sphi 0, %s15
    %s18 = sphi 0, %s16
    %s19 = sphi 0, %s17
    %s20 = sphi 0, %s18
    %s30 = sphi 0, %s32
    %s33 = sphi 0, %s30
    %s34 = sphi 0, %s33
    %s50 = sphi 0, %s34
    %s58 = sphi 0, %s60
    %s61 = sphi 0, %s58
    %s62 = sphi 0, %s61
    %s78 = sphi 0, %s62
    %s86 = sphi 0, %s88
    %s89 = sphi 0, %s86
    %s90 = sphi 0, %s89
    %s106 = sphi 0, %s90
  $region4: #{panet_forward.8} parent=0 // loop_header_branch
    %11 = sbr.rel (%p9) target = $region8
  $region5: #{panet_forward.8} parent=0 // loop_body
    %s13 = ssub.s32 %s8, 1
    %s14 = ssub.s32 %s8, 2
    %s21 = sadd.s32 1, %s16
    %p22 = scmp.ge.s32.totalorder %s21, 1
    %s23 = scalar_select %p22, 0, %s21
    %s24 = sadd.s32 1, %s15
    %s25 = scalar_select %p22, %s24, %s15
    %p26 = scmp.ge.s32.totalorder %s25, 2
    %s27 = scalar_select %p26, 0, %s25
    %s28 = ssub.s32 %s15, %s27
    %p29 = scmp.eq.s32.totalorder %s28, 0
    %s31 = sadd.s32 %s30, 1
    %s32 = scalar_select %p29, %s30, %s31
    %p35 = pneg %p29
    %p36 = scmp.eq.s32.totalorder %s8, 1
    %p37 = por %p35, %p36
    %p38 = scmp.ne.s32.totalorder %s30, %s33
    %p39 = scmp.eq.s32.totalorder %s8, 0
    %p40 = por %p38, %p39
    %p41 = scmp.ne.s32.totalorder %s30, %s33
    %p42 = scmp.eq.s32.totalorder %s13, 1
    %p43 = por %p41, %p42
    %p44 = scmp.ne.s32.totalorder %s33, %s34
    %p45 = scmp.eq.s32.totalorder %s13, 0
    %p46 = por %p44, %p45
    %p47 = scmp.ne.s32.totalorder %s33, %s34
    %p48 = scmp.eq.s32.totalorder %s14, 1
    %p49 = por %p47, %p48
    %p51 = scmp.ne.s32.totalorder %s34, %s50
    %p52 = scmp.eq.s32.totalorder %s14, 0
    %p53 = por %p51, %p52
    %s54 = ssub.s32 %s15, %s27
    %s55 = ssub.s32 %s16, %s23
    %s56 = sor.u32 %s54, %s55
    %p57 = scmp.eq.s32.totalorder %s56, 0
    %s59 = sadd.s32 %s58, 1
    %s60 = scalar_select %p57, %s58, %s59
    %p63 = pneg %p57
    %p64 = scmp.eq.s32.totalorder %s8, 1
    %p65 = por %p63, %p64
    %p66 = scmp.ne.s32.totalorder %s58, %s61
    %p67 = scmp.eq.s32.totalorder %s8, 0
    %p68 = por %p66, %p67
    %p69 = scmp.ne.s32.totalorder %s58, %s61
    %p70 = scmp.eq.s32.totalorder %s13, 1
    %p71 = por %p69, %p70
    %p72 = scmp.ne.s32.totalorder %s61, %s62
    %p73 = scmp.eq.s32.totalorder %s13, 0
    %p74 = por %p72, %p73
    %p75 = scmp.ne.s32.totalorder %s61, %s62
    %p76 = scmp.eq.s32.totalorder %s14, 1
    %p77 = por %p75, %p76
    %p79 = scmp.ne.s32.totalorder %s62, %s78
    %p80 = scmp.eq.s32.totalorder %s14, 0
    %p81 = por %p79, %p80
    %s82 = ssub.s32 %s15, %s27
    %s83 = ssub.s32 %s16, %s23
    %s84 = sor.u32 %s82, %s83
    %p85 = scmp.eq.s32.totalorder %s84, 0
    %s87 = sadd.s32 %s86, 1
    %s88 = scalar_select %p85, %s86, %s87
    %p91 = pneg %p85
    %p92 = scmp.eq.s32.totalorder %s8, 1
    %p93 = por %p91, %p92
    %p94 = scmp.ne.s32.totalorder %s86, %s89
    %p95 = scmp.eq.s32.totalorder %s8, 0
    %p96 = por %p94, %p95
    %p97 = scmp.ne.s32.totalorder %s86, %s89
    %p98 = scmp.eq.s32.totalorder %s13, 1
    %p99 = por %p97, %p98
    %p100 = scmp.ne.s32.totalorder %s89, %s90
    %p101 = scmp.eq.s32.totalorder %s13, 0
    %p102 = por %p100, %p101
    %p103 = scmp.ne.s32.totalorder %s89, %s90
    %p104 = scmp.eq.s32.totalorder %s14, 1
    %p105 = por %p103, %p104
    %p107 = scmp.ne.s32.totalorder %s90, %s106
    %p108 = scmp.eq.s32.totalorder %s14, 0
    %p109 = por %p107, %p108
    %p110 = scmp.le.s32.totalorder 1, %s8
    %p111 = scmp.lt.s32.totalorder %s8, 3
    %p112 = pnand %p110, %p111
    %p113 = pneg %p112
    // Predicated region
    $region9: #{panet_forward.8} parent=5 // pred_check
      _
    $region10: #{panet_forward.8} parent=5 // pred_check_branch
      %115 = sbr.rel (%p112) target = $region12
    $region11: #{panet_forward.8} parent=5 // pred_region
      %s116 = ssub.s32 %s8, 1
    $region12: #{panet_forward.8} parent=5 // pred_fallthru
      _
    %p117 = scmp.lt.s32.totalorder %s8, 2
    // Predicated region
    $region13: #{panet_forward.8} parent=5 // pred_check
      %p118 = pneg %p117
    $region14: #{panet_forward.8} parent=5 // pred_check_branch
      %120 = sbr.rel (%p118) target = $region16
    $region15: #{panet_forward.8} parent=5 // pred_region
      // Predicated region
      $region17: #{panet_forward.8} parent=15 // pred_check
        %p121 = pneg %p40
      $region18: #{panet_forward.8} parent=15 // pred_check_branch
        %123 = sbr.rel (%p121) target = $region20
      $region19: #{panet_forward.8} parent=15 // pred_region
        %p124 = scmp.lt.s32.totalorder %s15, 1
        %s125 = scalar_select %p124, %s15, 1
        %s126 = smul.addr %s125, 2
        %s127 = scalar_lea.vmem %s0, %s126
      $region20: #{panet_forward.8} parent=15 // pred_fallthru
        _
      // Predicated region
      $region21: #{panet_forward.8} parent=15 // pred_check
        %p128 = pneg %p68
      $region22: #{panet_forward.8} parent=15 // pred_check_branch
        %130 = sbr.rel (%p128) target = $region24
      $region23: #{panet_forward.8} parent=15 // pred_region
        %s131 = smul.u32 16, %s16
        %p132 = scmp.lt.s32.totalorder %s15, 1
        %s133 = scalar_select %p132, %s15, 1
        %p134 = scmp.lt.s32.totalorder %s131, 15
        %s135 = scalar_select %p134, %s131, 15
        %s136 = smul.addr %s133, 16
        %s137 = sadd.s32 %s135, %s136
        %s138 = smul.addr %s137, 4
        %s139 = scalar_lea.vmem %s1, %s138
        %s140 = smul.u32 16, %s16
      $region24: #{panet_forward.8} parent=15 // pred_fallthru
        _
    $region16: #{panet_forward.8} parent=5 // pred_fallthru
      _
    %p141 = scmp.le.s32.totalorder 1, %s8
    %p142 = scmp.lt.s32.totalorder %s8, 3
    %p143 = pnand %p141, %p142
    %p144 = pneg %p143
    // Predicated region
    $region25: #{panet_forward.8} parent=5 // pred_check
      _
    $region26: #{panet_forward.8} parent=5 // pred_check_branch
      %146 = sbr.rel (%p143) target = $region28
    $region27: #{panet_forward.8} parent=5 // pred_region
      %s147 = ssub.s32 %s8, 1
      %p148 = scmp.lt.s32.totalorder %s17, 1
      %s149 = scalar_select %p148, %s17, 1
      %s150 = smul.addr %s149, 2
      %s151 = scalar_lea.vmem %s0, %s150
      %p152 = pneg %p46
      %p153 = pneg %p43
      %s154 = smul.u32 16, %s18
      %p155 = scmp.lt.s32.totalorder %s17, 1
      %s156 = scalar_select %p155, %s17, 1
      %p157 = scmp.lt.s32.totalorder %s154, 15
      %s158 = scalar_select %p157, %s154, 15
      %s159 = smul.addr %s156, 16
      %s160 = sadd.s32 %s158, %s159
      %s161 = smul.addr %s160, 4
      %s162 = scalar_lea.vmem %s1, %s161
      %p163 = pneg %p74
      %p164 = pneg %p71
      %p165 = pneg %p102
      %p166 = pneg %p99
      %p167 = scmp.lt.s32.totalorder %s17, 1
      %s168 = scalar_select %p167, %s17, 1
      %p169 = scmp.lt.s32.totalorder %s18, 0
      %s170 = scalar_select %p169, %s18, 0
      %s171 = sadd.s32 %s170, %s168
      %s172 = smul.addr %s171, 4
      %s173 = scalar_lea.vmem %s2, %s172
      %p174 = scmp.lt.s32.totalorder %s17, 1
      %s175 = scalar_select %p174, %s17, 1
      %s176 = smul.addr %s175, 2
      %s177 = scalar_lea.vmem %s0, %s176
      %s178 = smul.u32 16, %s18
      %p179 = scmp.lt.s32.totalorder %s17, 1
      %s180 = scalar_select %p179, %s17, 1
      %p181 = scmp.lt.s32.totalorder %s178, 15
      %s182 = scalar_select %p181, %s178, 15
      %s183 = smul.addr %s180, 16
      %s184 = sadd.s32 %s182, %s183
      %s185 = smul.addr %s184, 4
      %s186 = scalar_lea.vmem %s1, %s185
      %s187 = smul.u32 16, %s18
      %p188 = scmp.lt.s32.totalorder %s17, 1
      %s189 = scalar_select %p188, %s17, 1
      %p190 = scmp.lt.s32.totalorder %s18, 0
      %s191 = scalar_select %p190, %s18, 0
      %s192 = sadd.s32 %s191, %s189
      %s193 = smul.addr %s192, 4
      %s194 = scalar_lea.vmem %s2, %s193
      %v196 = vld [vmem:[%s177] sm:$0x3]
      %v197 = vld [vmem:[%s186] sm:$0xf]
      %v198 = vld [vmem:[%s186 + $0x4] sm:$0xf]
      %v199 = vld [vmem:[%s186 + $0x8] sm:$0xf]
      %v200 = vld [vmem:[%s186 + $0xc] sm:$0xf]
      %v201 = vld [vmem:[%s186 + $0x10] sm:$0xf]
      %v202 = vld [vmem:[%s186 + $0x14] sm:$0xf]
      %v203 = vld [vmem:[%s186 + $0x18] sm:$0xf]
      %v204 = vld [vmem:[%s186 + $0x1c] sm:$0xf]
      %v205 = vld [vmem:[%s186 + $0x20] sm:$0xf]
      %v206 = vld [vmem:[%s186 + $0x24] sm:$0xf]
      %v207 = vld [vmem:[%s186 + $0x28] sm:$0xf]
      %v208 = vld [vmem:[%s186 + $0x2c] sm:$0xf]
      %v209 = vld [vmem:[%s186 + $0x30] sm:$0xf]
      %v210 = vld [vmem:[%s186 + $0x34] sm:$0xf]
      %v211 = vld [vmem:[%s186 + $0x38] sm:$0xf]
      %v212 = vld [vmem:[%s186 + $0x3c] sm:$0xf]
      %v229 = vunpack.c.l.b16 %v197
      %v230 = vunpack.c.l.b16 %v198
      %v231 = vunpack.c.l.b16 %v199
      %v232 = vunpack.c.l.b16 %v200
      %v233 = vunpack.c.l.b16 %v201
      %v234 = vunpack.c.l.b16 %v202
      %v235 = vunpack.c.l.b16 %v203
      %v236 = vunpack.c.l.b16 %v204
      %v237 = vunpack.c.l.b16 %v205
      %v238 = vunpack.c.l.b16 %v206
      %v239 = vunpack.c.l.b16 %v207
      %v240 = vunpack.c.l.b16 %v208
      %v241 = vunpack.c.l.b16 %v209
      %v242 = vunpack.c.l.b16 %v210
      %v243 = vunpack.c.l.b16 %v211
      %v244 = vunpack.c.l.b16 %v212
      %v245 = vpack.c.b16 %v230, %v229
      %v246 = vpack.c.b16 %v232, %v231
      %v247 = vpack.c.b16 %v234, %v233
      %v248 = vpack.c.b16 %v236, %v235
      %v249 = vpack.c.b16 %v238, %v237
      %v250 = vpack.c.b16 %v240, %v239
      %v251 = vpack.c.b16 %v242, %v241
      %v252 = vpack.c.b16 %v244, %v243
      %vm253 = vcmask 261120
      %v255 = vsel %vm253, %v196, 0
      %v258 = vsel %vm253, %v245, 0
      %v261 = vsel %vm253, %v246, 0
      %v264 = vsel %vm253, %v247, 0
      %v267 = vsel %vm253, %v248, 0
      %v270 = vsel %vm253, %v249, 0
      %v273 = vsel %vm253, %v250, 0
      %v276 = vsel %vm253, %v251, 0
      %v279 = vsel %vm253, %v252, 0
      %281 = vmatprep.subr.bf16.mxu0 0
      %282 = vmatpush1.bf16.xpose.msra.mxu0 %v258
      %283 = vmatprep.subr.bf16.mxu0 0
      %284 = vmatpush1.bf16.xpose.msra.mxu0 %v261
      %285 = vmatprep.subr.bf16.mxu0 0
      %286 = vmatpush1.bf16.xpose.msra.mxu0 %v264
      %287 = vmatprep.subr.bf16.mxu0 0
      %288 = vmatpush1.bf16.xpose.msra.mxu0 %v267
      %289 = vmatprep.subr.bf16.mxu0 0
      %290 = vmatpush1.bf16.xpose.msra.mxu0 %v270
      %291 = vmatprep.subr.bf16.mxu0 0
      %292 = vmatpush1.bf16.xpose.msra.mxu0 %v273
      %293 = vmatprep.subr.bf16.mxu0 0
      %294 = vmatpush1.bf16.xpose.msra.mxu0 %v276
      %295 = vmatprep.subr.bf16.mxu0 0
      %296 = vmatpush1.bf16.xpose.msra.mxu0 %v279
      %297 = vmatprep.subr.bf16.mxu0 0
      %298 = vmatpush1.bf16.xpose.msra.mxu0 0
      %299 = vmatprep.subr.bf16.mxu0 0
      %300 = vmatpush1.bf16.xpose.msra.mxu0 0
      %301 = vmatprep.subr.bf16.mxu0 0
      %302 = vmatpush1.bf16.xpose.msra.mxu0 0
      %303 = vmatprep.subr.bf16.mxu0 0
      %304 = vmatpush1.bf16.xpose.msra.mxu0 0
      %305 = vmatprep.subr.bf16.mxu0 0
      %306 = vmatpush1.bf16.xpose.msra.mxu0 0
      %307 = vmatprep.subr.bf16.mxu0 0
      %308 = vmatpush1.bf16.xpose.msra.mxu0 0
      %309 = vmatprep.subr.bf16.mxu0 0
      %310 = vmatpush1.bf16.xpose.msra.mxu0 0
      %311 = vmatprep.subr.bf16.mxu0 0
      %312 = vmatpush1.bf16.xpose.msra.mxu0 0
      %313 = vmatprep.mubr.bf16.mxu0 0
      %314 = vmatmul.mubr.bf16.gmra.mrb[0].mxu0 %v255
      %v315 = vpop.f32.mrb[0].mxu0
      %v316 = vadd.f32 0.0, %v315
      %v317 = vpop.f32.mrb[0].mxu0
      %v318 = vpop.f32.mrb[0].mxu0
      %v319 = vpop.f32.mrb[0].mxu0
      %320 = vdwg.mxu0
      %v321 = vunpack.c.l.bf16 %v197
      %v322 = vunpack.c.l.bf16 %v198
      %v323 = vunpack.c.l.bf16 %v199
      %v324 = vunpack.c.l.bf16 %v200
      %v325 = vunpack.c.l.bf16 %v201
      %v326 = vunpack.c.l.bf16 %v202
      %v327 = vunpack.c.l.bf16 %v203
      %v328 = vunpack.c.l.bf16 %v204
      %v329 = vunpack.c.l.bf16 %v205
      %v330 = vunpack.c.l.bf16 %v206
      %v331 = vunpack.c.l.bf16 %v207
      %v332 = vunpack.c.l.bf16 %v208
      %v333 = vunpack.c.l.bf16 %v209
      %v334 = vunpack.c.l.bf16 %v210
      %v335 = vunpack.c.l.bf16 %v211
      %v336 = vunpack.c.l.bf16 %v212
      %v337 = vmul.f32 %v321, %v321
      %v338 = vmul.f32 %v322, %v322
      %v339 = vmul.f32 %v323, %v323
      %v340 = vmul.f32 %v324, %v324
      %v341 = vmul.f32 %v325, %v325
      %v342 = vmul.f32 %v326, %v326
      %v343 = vmul.f32 %v327, %v327
      %v344 = vmul.f32 %v328, %v328
      %v345 = vmul.f32 %v329, %v329
      %v346 = vmul.f32 %v330, %v330
      %v347 = vmul.f32 %v331, %v331
      %v348 = vmul.f32 %v332, %v332
      %v349 = vmul.f32 %v333, %v333
      %v350 = vmul.f32 %v334, %v334
      %v351 = vmul.f32 %v335, %v335
      %v352 = vmul.f32 %v336, %v336
      %v354 = vsel %vm253, 1.0, 0
      %v357 = vsel %vm253, %v337, 0
      %v360 = vsel %vm253, %v338, 0
      %v363 = vsel %vm253, %v339, 0
      %v366 = vsel %vm253, %v340, 0
      %v369 = vsel %vm253, %v341, 0
      %v372 = vsel %vm253, %v342, 0
      %v375 = vsel %vm253, %v343, 0
      %v378 = vsel %vm253, %v344, 0
      %v381 = vsel %vm253, %v345, 0
      %v384 = vsel %vm253, %v346, 0
      %v387 = vsel %vm253, %v347, 0
      %v390 = vsel %vm253, %v348, 0
      %v393 = vsel %vm253, %v349, 0
      %v396 = vsel %vm253, %v350, 0
      %v399 = vsel %vm253, %v351, 0
      %v402 = vsel %vm253, %v352, 0
      %404 = vmatprep.subr.mxu0 0.0
      %405 = vmatpush1.xpose.msra.mxu0 %v357
      %406 = vmatprep.subr.mxu0 0.0
      %407 = vmatpush1.xpose.msra.mxu0 %v360
      %408 = vmatprep.subr.mxu0 0.0
      %409 = vmatpush1.xpose.msra.mxu0 %v363
      %410 = vmatprep.subr.mxu0 0.0
      %411 = vmatpush1.xpose.msra.mxu0 %v366
      %412 = vmatprep.subr.mxu0 0.0
      %413 = vmatpush1.xpose.msra.mxu0 %v369
      %414 = vmatprep.subr.mxu0 0.0
      %415 = vmatpush1.xpose.msra.mxu0 %v372
      %416 = vmatprep.subr.mxu0 0.0
      %417 = vmatpush1.xpose.msra.mxu0 %v375
      %418 = vmatprep.subr.mxu0 0.0
      %419 = vmatpush1.xpose.msra.mxu0 %v378
      %420 = vmatprep.subr.mxu0 0.0
      %421 = vmatpush1.xpose.msra.mxu0 %v381
      %422 = vmatprep.subr.mxu0 0.0
      %423 = vmatpush1.xpose.msra.mxu0 %v384
      %424 = vmatprep.subr.mxu0 0.0
      %425 = vmatpush1.xpose.msra.mxu0 %v387
      %426 = vmatprep.subr.mxu0 0.0
      %427 = vmatpush1.xpose.msra.mxu0 %v390
      %428 = vmatprep.subr.mxu0 0.0
      %429 = vmatpush1.xpose.msra.mxu0 %v393
      %430 = vmatprep.subr.mxu0 0.0
      %431 = vmatpush1.xpose.msra.mxu0 %v396
      %432 = vmatprep.subr.mxu0 0.0
      %433 = vmatpush1.xpose.msra.mxu0 %v399
      %434 = vmatprep.subr.mxu0 0.0
      %435 = vmatpush1.xpose.msra.mxu0 %v402
      %436 = vmatprep.subr.mxu0 0.0
      %437 = vmatpush1.xpose.msra.mxu0 0.0
      %438 = vmatprep.subr.mxu0 0.0
      %439 = vmatpush1.xpose.msra.mxu0 0.0
      %440 = vmatprep.subr.mxu0 0.0
      %441 = vmatpush1.xpose.msra.mxu0 0.0
      %442 = vmatprep.subr.mxu0 0.0
      %443 = vmatpush1.xpose.msra.mxu0 0.0
      %444 = vmatprep.subr.mxu0 0.0
      %445 = vmatpush1.xpose.msra.mxu0 0.0
      %446 = vmatprep.subr.mxu0 0.0
      %447 = vmatpush1.xpose.msra.mxu0 0.0
      %448 = vmatprep.subr.mxu0 0.0
      %449 = vmatpush1.xpose.msra.mxu0 0.0
      %450 = vmatprep.subr.mxu0 0.0
      %451 = vmatpush1.xpose.msra.mxu0 0.0
      %452 = vmatprep.subr.mxu0 0.0
      %453 = vmatpush1.xpose.msra.mxu0 0.0
      %454 = vmatprep.subr.mxu0 0.0
      %455 = vmatpush1.xpose.msra.mxu0 0.0
      %456 = vmatprep.subr.mxu0 0.0
      %457 = vmatpush1.xpose.msra.mxu0 0.0
      %458 = vmatprep.subr.mxu0 0.0
      %459 = vmatpush1.xpose.msra.mxu0 0.0
      %460 = vmatprep.subr.mxu0 0.0
      %461 = vmatpush1.xpose.msra.mxu0 0.0
      %462 = vmatprep.subr.mxu0 0.0
      %463 = vmatpush1.xpose.msra.mxu0 0.0
      %464 = vmatprep.subr.mxu0 0.0
      %465 = vmatpush1.xpose.msra.mxu0 0.0
      %466 = vmatprep.subr.mxu0 0.0
      %467 = vmatpush1.xpose.msra.mxu0 0.0
      %468 = vmatprep.mubr.f32.mxu0 0.0
      %469 = vmatmul.mubr.f32.gmra.mrb[0].mxu0 %v354
      %v470 = vpop.f32.mrb[0].mxu0
      %v471 = vadd.f32 0.0, %v470
      %v472 = vpop.f32.mrb[0].mxu0
      %473 = vdwg.mxu0
      %v474 = vunpack.c.l.bf16 %v196
      %v475 = vmul.f32 %v474, %v474
      %vm476 = vcmask 256000
      %v477 = vsel %vm476, %v475, 0.0
      %478 = vadd.xlane.f32.xlu0 %v477
      %v479 = vpop.xlane.xlu0 %478
      %v480 = vmax.f32 %v471, 1e-16
      %v481 = vrsqrt.pop %v480
      %v482 = vmax.f32 %v479, 1e-16
      %v483 = vrsqrt.pop %v482
      %v484 = vlaneseq
      %v485 = vshrl.u32 %v484, 7
      %v486 = vsub.s32 0, %v485
      %v487 = vrot.slane %v481, %v486
      %v488 = vmul.f32 %v487, %v483
      %v489 = vmul.f32 %v316, %v488
      %v490 = vmul.f32 %v489, 20.0
      %491 = vst [vmem:[%s194] sm:$0x7] %v490
      %p492 = scmp.lt.s32.totalorder %s17, 1
      %s493 = scalar_select %p492, %s17, 1
      %p494 = scmp.lt.s32.totalorder %s18, 0
      %s495 = scalar_select %p494, %s18, 0
      %s496 = sadd.s32 %s495, %s493
      %s497 = smul.addr %s496, 4
      %s498 = scalar_lea.vmem %s2, %s497
      // Predicated region
      $region29: #{panet_forward.8} parent=27 // pred_check
        %p499 = pneg %p99
      $region30: #{panet_forward.8} parent=27 // pred_check_branch
        %501 = sbr.rel (%p499) target = $region32
      $region31: #{panet_forward.8} parent=27 // pred_region
        _
      $region32: #{panet_forward.8} parent=27 // pred_fallthru
        _
    $region28: #{panet_forward.8} parent=5 // pred_fallthru
      _
    %p502 = scmp.le.s32.totalorder 2, %s8
    // Predicated region
    $region33: #{panet_forward.8} parent=5 // pred_check
      %p503 = pneg %p502
    $region34: #{panet_forward.8} parent=5 // pred_check_branch
      %505 = sbr.rel (%p503) target = $region36
    $region35: #{panet_forward.8} parent=5 // pred_region
      %s506 = ssub.s32 %s8, 2
      // Predicated region
      $region37: #{panet_forward.8} parent=35 // pred_check
        %p507 = pneg %p105
      $region38: #{panet_forward.8} parent=35 // pred_check_branch
        %509 = sbr.rel (%p507) target = $region40
      $region39: #{panet_forward.8} parent=35 // pred_region
        %p510 = scmp.lt.s32.totalorder %s19, 1
        %s511 = scalar_select %p510, %s19, 1
        %p512 = scmp.lt.s32.totalorder %s20, 0
        %s513 = scalar_select %p512, %s20, 0
        %s514 = sadd.s32 %s513, %s511
        %s515 = smul.addr %s514, 4
        %s516 = scalar_lea.vmem %s2, %s515
      $region40: #{panet_forward.8} parent=35 // pred_fallthru
        _
    $region36: #{panet_forward.8} parent=5 // pred_fallthru
      _
  $region6: #{panet_forward.8} parent=0 // loop_footer
    %s12 = sadd.s32 1, %s8
  $region7: #{panet_forward.8} parent=0 // loop_footer_branch
    %7 = sbr.rel target = $region3
  $region8: #{panet_forward.8} parent=0 // loop_exit
    _

// kernel: panet_forward.9
$region0: #{panet_forward.9}
  #allocation0 [shape = 'u32[]', space=smem, size = 0x4, offset = 0x4, fixed_abs, tag = 'smem constant byte address 0x4 - core index']
  #allocation1 [shape = 'u32[144,128]{1,0:T(1,128)}', space=vmem, size = 0x12000, scoped, tag = 'internal scratch']
  %s0 = inlined_call_operand.vmem [shape: f32[2,64,32], index: 0, kind: input, shape index: {}]
  %s1 = inlined_call_operand.vmem [shape: f32[2,3,64], index: 1, kind: input, shape index: {}]
  %s2 = inlined_call_operand.vmem [shape: f32[2,3,32], index: 2, kind: output, shape index: {}]
  %s3 = sld [smem:[#allocation0]]
  $region41: #{panet_forward.9} parent=0
    _
  %s5 = ssub.s32 1, %s3
  %s6 = scalar_select 0, %s5, %s3
  loop: start=0, step=1, limit=4
  $region2: #{panet_forward.9} parent=0 // loop_pre_header
    _
  $region3: #{panet_forward.9} parent=0 // loop_header
    %s8 = sphi 0, %s12
    %p9 = scmp.ge.s32.totalorder %s8, 4
    %s18 = sphi 0, %s20
    %s21 = sphi 0, %s18
    %s22 = sphi 0, %s21
    %s38 = sphi 0, %s22
    %s44 = sphi 0, %s46
    %s47 = sphi 0, %s44
    %s48 = sphi 0, %s47
    %s64 = sphi 0, %s48
    %s70 = sphi 0, %s72
    %s73 = sphi 0, %s70
    %s74 = sphi 0, %s73
    %s90 = sphi 0, %s74
  $region4: #{panet_forward.9} parent=0 // loop_header_branch
    %11 = sbr.rel (%p9) target = $region8
  $region5: #{panet_forward.9} parent=0 // loop_body
    %s13 = ssub.s32 %s8, 1
    %s14 = ssub.s32 %s8, 2
    %s15 = sadd.s32 %s8, 1
    %s16 = ssub.s32 %s8, %s15
    %p17 = scmp.eq.s32.totalorder %s16, 0
    %s19 = sadd.s32 %s18, 1
    %s20 = scalar_select %p17, %s18, %s19
    %p23 = pneg %p17
    %p24 = scmp.eq.s32.totalorder %s8, 1
    %p25 = por %p23, %p24
    %p26 = scmp.ne.s32.totalorder %s18, %s21
    %p27 = scmp.eq.s32.totalorder %s8, 0
    %p28 = por %p26, %p27
    %p29 = scmp.ne.s32.totalorder %s18, %s21
    %p30 = scmp.eq.s32.totalorder %s13, 1
    %p31 = por %p29, %p30
    %p32 = scmp.ne.s32.totalorder %s21, %s22
    %p33 = scmp.eq.s32.totalorder %s13, 0
    %p34 = por %p32, %p33
    %p35 = scmp.ne.s32.totalorder %s21, %s22
    %p36 = scmp.eq.s32.totalorder %s14, 1
    %p37 = por %p35, %p36
    %p39 = scmp.ne.s32.totalorder %s22, %s38
    %p40 = scmp.eq.s32.totalorder %s14, 0
    %p41 = por %p39, %p40
    %s42 = ssub.s32 %s8, %s15
    %p43 = scmp.eq.s32.totalorder %s42, 0
    %s45 = sadd.s32 %s44, 1
    %s46 = scalar_select %p43, %s44, %s45
    %p49 = pneg %p43
    %p50 = scmp.eq.s32.totalorder %s8, 1
    %p51 = por %p49, %p50
    %p52 = scmp.ne.s32.totalorder %s44, %s47
    %p53 = scmp.eq.s32.totalorder %s8, 0
    %p54 = por %p52, %p53
    %p55 = scmp.ne.s32.totalorder %s44, %s47
    %p56 = scmp.eq.s32.totalorder %s13, 1
    %p57 = por %p55, %p56
    %p58 = scmp.ne.s32.totalorder %s47, %s48
    %p59 = scmp.eq.s32.totalorder %s13, 0
    %p60 = por %p58, %p59
    %p61 = scmp.ne.s32.totalorder %s47, %s48
    %p62 = scmp.eq.s32.totalorder %s14, 1
    %p63 = por %p61, %p62
    %p65 = scmp.ne.s32.totalorder %s48, %s64
    %p66 = scmp.eq.s32.totalorder %s14, 0
    %p67 = por %p65, %p66
    %s68 = ssub.s32 %s8, %s15
    %p69 = scmp.eq.s32.totalorder %s68, 0
    %s71 = sadd.s32 %s70, 1
    %s72 = scalar_select %p69, %s70, %s71
    %p75 = pneg %p69
    %p76 = scmp.eq.s32.totalorder %s8, 1
    %p77 = por %p75, %p76
    %p78 = scmp.ne.s32.totalorder %s70, %s73
    %p79 = scmp.eq.s32.totalorder %s8, 0
    %p80 = por %p78, %p79
    %p81 = scmp.ne.s32.totalorder %s70, %s73
    %p82 = scmp.eq.s32.totalorder %s13, 1
    %p83 = por %p81, %p82
    %p84 = scmp.ne.s32.totalorder %s73, %s74
    %p85 = scmp.eq.s32.totalorder %s13, 0
    %p86 = por %p84, %p85
    %p87 = scmp.ne.s32.totalorder %s73, %s74
    %p88 = scmp.eq.s32.totalorder %s14, 1
    %p89 = por %p87, %p88
    %p91 = scmp.ne.s32.totalorder %s74, %s90
    %p92 = scmp.eq.s32.totalorder %s14, 0
    %p93 = por %p91, %p92
    %p94 = scmp.le.s32.totalorder 1, %s8
    %p95 = scmp.lt.s32.totalorder %s8, 3
    %p96 = pnand %p94, %p95
    %p97 = pneg %p96
    // Predicated region
    $region9: #{panet_forward.9} parent=5 // pred_check
      _
    $region10: #{panet_forward.9} parent=5 // pred_check_branch
      %99 = sbr.rel (%p96) target = $region12
    $region11: #{panet_forward.9} parent=5 // pred_region
      %s100 = ssub.s32 %s8, 1
    $region12: #{panet_forward.9} parent=5 // pred_fallthru
      _
    %p101 = scmp.lt.s32.totalorder %s8, 2
    // Predicated region
    $region13: #{panet_forward.9} parent=5 // pred_check
      %p102 = pneg %p101
    $region14: #{panet_forward.9} parent=5 // pred_check_branch
      %104 = sbr.rel (%p102) target = $region16
    $region15: #{panet_forward.9} parent=5 // pred_region
      // Predicated region
      $region17: #{panet_forward.9} parent=15 // pred_check
        %p105 = pneg %p28
      $region18: #{panet_forward.9} parent=15 // pred_check_branch
        %107 = sbr.rel (%p105) target = $region20
      $region19: #{panet_forward.9} parent=15 // pred_region
        %p108 = scmp.lt.s32.totalorder %s8, 1
        %s109 = scalar_select %p108, %s8, 1
        %s110 = smul.addr %s109, 8
        %s111 = smul.addr %s110, 8
        %s112 = scalar_lea.vmem %s0, %s111
      $region20: #{panet_forward.9} parent=15 // pred_fallthru
        _
      // Predicated region
      $region21: #{panet_forward.9} parent=15 // pred_check
        %p113 = pneg %p54
      $region22: #{panet_forward.9} parent=15 // pred_check_branch
        %115 = sbr.rel (%p113) target = $region24
      $region23: #{panet_forward.9} parent=15 // pred_region
        %p116 = scmp.lt.s32.totalorder %s8, 1
        %s117 = scalar_select %p116, %s8, 1
        %s118 = smul.addr %s117, 4
        %s119 = scalar_lea.vmem %s1, %s118
      $region24: #{panet_forward.9} parent=15 // pred_fallthru
        _
    $region16: #{panet_forward.9} parent=5 // pred_fallthru
      _
    %p120 = scmp.le.s32.totalorder 1, %s8
    %p121 = scmp.lt.s32.totalorder %s8, 3
    %p122 = pnand %p120, %p121
    %p123 = pneg %p122
    // Predicated region
    $region25: #{panet_forward.9} parent=5 // pred_check
      _
    $region26: #{panet_forward.9} parent=5 // pred_check_branch
      %125 = sbr.rel (%p122) target = $region28
    $region27: #{panet_forward.9} parent=5 // pred_region
      %s126 = ssub.s32 %s8, 1
      %p127 = scmp.lt.s32.totalorder %s13, 1
      %s128 = scalar_select %p127, %s13, 1
      %s129 = smul.addr %s128, 8
      %s130 = smul.addr %s129, 8
      %s131 = scalar_lea.vmem %s0, %s130
      %p132 = pneg %p34
      %p133 = pneg %p31
      %p134 = scmp.lt.s32.totalorder %s13, 1
      %s135 = scalar_select %p134, %s13, 1
      %s136 = smul.addr %s135, 4
      %s137 = scalar_lea.vmem %s1, %s136
      %p138 = pneg %p60
      %p139 = pneg %p57
      %p140 = pneg %p86
      %p141 = pneg %p83
      %p142 = scmp.lt.s32.totalorder %s13, 1
      %s143 = scalar_select %p142, %s13, 1
      %s144 = smul.addr %s143, 4
      %s145 = scalar_lea.vmem %s2, %s144
      %p146 = scmp.lt.s32.totalorder %s13, 1
      %s147 = scalar_select %p146, %s13, 1
      %s148 = smul.addr %s147, 8
      %s149 = smul.addr %s148, 8
      %s150 = scalar_lea.vmem %s0, %s149
      %p151 = scmp.lt.s32.totalorder %s13, 1
      %s152 = scalar_select %p151, %s13, 1
      %s153 = smul.addr %s152, 4
      %s154 = scalar_lea.vmem %s1, %s153
      %p155 = scmp.lt.s32.totalorder %s13, 1
      %s156 = scalar_select %p155, %s13, 1
      %s157 = smul.addr %s156, 4
      %s158 = scalar_lea.vmem %s2, %s157
      %v159 = vld [vmem:[%s150] sm:$0xff]
      %v160 = vld [vmem:[%s150 + $0x8] sm:$0xff]
      %v161 = vld [vmem:[%s150 + $0x10] sm:$0xff]
      %v162 = vld [vmem:[%s150 + $0x18] sm:$0xff]
      %v163 = vld [vmem:[%s150 + $0x20] sm:$0xff]
      %v164 = vld [vmem:[%s150 + $0x28] sm:$0xff]
      %v165 = vld [vmem:[%s150 + $0x30] sm:$0xff]
      %v166 = vld [vmem:[%s150 + $0x38] sm:$0xff]
      %v167 = vld [vmem:[%s154] sm:$0x7]
      %vm168 = vcmask 523264
      %v170 = vsel %vm168, %v167, 0
      %172 = vmatprep.subr.mxu0 0.0
      %173 = vmatpush1.msra.mxu0 %v159
      %174 = vmatprep.subr.mxu0 0.0
      %175 = vmatpush1.msra.mxu0 %v160
      %176 = vmatprep.subr.mxu0 0.0
      %177 = vmatpush1.msra.mxu0 %v161
      %178 = vmatprep.subr.mxu0 0.0
      %179 = vmatpush1.msra.mxu0 %v162
      %180 = vmatprep.subr.mxu0 0.0
      %181 = vmatpush1.msra.mxu0 %v163
      %182 = vmatprep.subr.mxu0 0.0
      %183 = vmatpush1.msra.mxu0 %v164
      %184 = vmatprep.subr.mxu0 0.0
      %185 = vmatpush1.msra.mxu0 %v165
      %186 = vmatprep.subr.mxu0 0.0
      %187 = vmatpush1.msra.mxu0 %v166
      %188 = vmatprep.subr.mxu0 0.0
      %189 = vmatpush1.msra.mxu0 0.0
      %190 = vmatprep.subr.mxu0 0.0
      %191 = vmatpush1.msra.mxu0 0.0
      %192 = vmatprep.subr.mxu0 0.0
      %193 = vmatpush1.msra.mxu0 0.0
      %194 = vmatprep.subr.mxu0 0.0
      %195 = vmatpush1.msra.mxu0 0.0
      %196 = vmatprep.subr.mxu0 0.0
      %197 = vmatpush1.msra.mxu0 0.0
      %198 = vmatprep.subr.mxu0 0.0
      %199 = vmatpush1.msra.mxu0 0.0
      %200 = vmatprep.subr.mxu0 0.0
      %201 = vmatpush1.msra.mxu0 0.0
      %202 = vmatprep.subr.mxu0 0.0
      %203 = vmatpush1.msra.mxu0 0.0
      %204 = vmatprep.subr.mxu0 0.0
      %205 = vmatpush1.msra.mxu0 0.0
      %206 = vmatprep.subr.mxu0 0.0
      %207 = vmatpush1.msra.mxu0 0.0
      %208 = vmatprep.subr.mxu0 0.0
      %209 = vmatpush1.msra.mxu0 0.0
      %210 = vmatprep.subr.mxu0 0.0
      %211 = vmatpush1.msra.mxu0 0.0
      %212 = vmatprep.subr.mxu0 0.0
      %213 = vmatpush1.msra.mxu0 0.0
      %214 = vmatprep.subr.mxu0 0.0
      %215 = vmatpush1.msra.mxu0 0.0
      %216 = vmatprep.subr.mxu0 0.0
      %217 = vmatpush1.msra.mxu0 0.0
      %218 = vmatprep.subr.mxu0 0.0
      %219 = vmatpush1.msra.mxu0 0.0
      %220 = vmatprep.subr.mxu0 0.0
      %221 = vmatpush1.msra.mxu0 0.0
      %222 = vmatprep.subr.mxu0 0.0
      %223 = vmatpush1.msra.mxu0 0.0
      %224 = vmatprep.subr.mxu0 0.0
      %225 = vmatpush1.msra.mxu0 0.0
      %226 = vmatprep.subr.mxu0 0.0
      %227 = vmatpush1.msra.mxu0 0.0
      %228 = vmatprep.subr.mxu0 0.0
      %229 = vmatpush1.msra.mxu0 0.0
      %230 = vmatprep.subr.mxu0 0.0
      %231 = vmatpush1.msra.mxu0 0.0
      %232 = vmatprep.subr.mxu0 0.0
      %233 = vmatpush1.msra.mxu0 0.0
      %234 = vmatprep.subr.mxu0 0.0
      %235 = vmatpush1.msra.mxu0 0.0
      %236 = vmatprep.mubr.f32.mxu0 0.0
      %237 = vmatmul.mubr.f32.gmra.mrb[0].mxu0 %v170
      %v238 = vpop.f32.mrb[0].mxu0
      %v239 = vadd.f32 0.0, %v238
      %v240 = vpop.f32.mrb[0].mxu0
      %241 = vdwg.mxu0
      %vm242 = vcmask 518144
      %v243 = vsel %vm242, %v167, 0.0
      %244 = vadd.xlane.f32.xlu0 %v243
      %v245 = vpop.xlane.xlu0 %244
      %v246 = vadd.f32 %v245, 1e-05
      %v247 = vrcp.pop %v246
      %v248 = vmul.f32 %v239, %v247
      %vm249 = vcmask 256000
      %250 = vst.msk [vmem:[%s158] sm:$0x7] %vm249, %v248
      %p251 = scmp.lt.s32.totalorder %s13, 1
      %s252 = scalar_select %p251, %s13, 1
      %s253 = smul.addr %s252, 4
      %s254 = scalar_lea.vmem %s2, %s253
      // Predicated region
      $region29: #{panet_forward.9} parent=27 // pred_check
        %p255 = pneg %p83
      $region30: #{panet_forward.9} parent=27 // pred_check_branch
        %257 = sbr.rel (%p255) target = $region32
      $region31: #{panet_forward.9} parent=27 // pred_region
        _
      $region32: #{panet_forward.9} parent=27 // pred_fallthru
        _
    $region28: #{panet_forward.9} parent=5 // pred_fallthru
      _
    %p258 = scmp.le.s32.totalorder 2, %s8
    // Predicated region
    $region33: #{panet_forward.9} parent=5 // pred_check
      %p259 = pneg %p258
    $region34: #{panet_forward.9} parent=5 // pred_check_branch
      %261 = sbr.rel (%p259) target = $region36
    $region35: #{panet_forward.9} parent=5 // pred_region
      %s262 = ssub.s32 %s8, 2
      // Predicated region
      $region37: #{panet_forward.9} parent=35 // pred_check
        %p263 = pneg %p89
      $region38: #{panet_forward.9} parent=35 // pred_check_branch
        %265 = sbr.rel (%p263) target = $region40
      $region39: #{panet_forward.9} parent=35 // pred_region
        %p266 = scmp.lt.s32.totalorder %s14, 1
        %s267 = scalar_select %p266, %s14, 1
        %s268 = smul.addr %s267, 4
        %s269 = scalar_lea.vmem %s2, %s268
      $region40: #{panet_forward.9} parent=35 // pred_fallthru
        _
    $region36: #{panet_forward.9} parent=5 // pred_fallthru
      _
  $region6: #{panet_forward.9} parent=0 // loop_footer
    %s12 = sadd.s32 1, %s8
  $region7: #{panet_forward.9} parent=0 // loop_footer_branch
    %7 = sbr.rel target = $region3
  $region8: #{panet_forward.9} parent=0 // loop_exit
    _

// kernel: panet_forward.10
$region0: #{panet_forward.10}
  #allocation0 [shape = 'u32[]', space=smem, size = 0x4, offset = 0x4, fixed_abs, tag = 'smem constant byte address 0x4 - core index']
  #allocation1 [shape = 'u32[144,128]{1,0:T(1,128)}', space=vmem, size = 0x12000, scoped, tag = 'internal scratch']
  %s0 = inlined_call_operand.vmem [shape: bf16[4,2,32], index: 0, kind: input, shape index: {}]
  %s1 = inlined_call_operand.vmem [shape: bf16[4,128,32], index: 1, kind: input, shape index: {}]
  %s2 = inlined_call_operand.vmem [shape: f32[4,2,128], index: 2, kind: output, shape index: {}]
  %s3 = sld [smem:[#allocation0]]
  $region41: #{panet_forward.10} parent=0
    _
  %s5 = ssub.s32 1, %s3
  %s6 = scalar_select 0, %s5, %s3
  loop: start=0, step=1, limit=6
  $region2: #{panet_forward.10} parent=0 // loop_pre_header
    _
  $region3: #{panet_forward.10} parent=0 // loop_header
    %s8 = sphi 0, %s12
    %p9 = scmp.ge.s32.totalorder %s8, 6
    %s15 = sphi 0, %s27
    %s16 = sphi 0, %s23
    %s17 = sphi 0, %s15
    %s18 = sphi 0, %s16
    %s19 = sphi 0, %s17
    %s20 = sphi 0, %s18
    %s30 = sphi 0, %s32
    %s33 = sphi 0, %s30
    %s34 = sphi 0, %s33
    %s50 = sphi 0, %s34
    %s58 = sphi 0, %s60
    %s61 = sphi 0, %s58
    %s62 = sphi 0, %s61
    %s78 = sphi 0, %s62
    %s86 = sphi 0, %s88
    %s89 = sphi 0, %s86
    %s90 = sphi 0, %s89
    %s106 = sphi 0, %s90
  $region4: #{panet_forward.10} parent=0 // loop_header_branch
    %11 = sbr.rel (%p9) target = $region8
  $region5: #{panet_forward.10} parent=0 // loop_body
    %s13 = ssub.s32 %s8, 1
    %s14 = ssub.s32 %s8, 2
    %s21 = sadd.s32 1, %s16
    %p22 = scmp.ge.s32.totalorder %s21, 1
    %s23 = scalar_select %p22, 0, %s21
    %s24 = sadd.s32 1, %s15
    %s25 = scalar_select %p22, %s24, %s15
    %p26 = scmp.ge.s32.totalorder %s25, 4
    %s27 = scalar_select %p26, 0, %s25
    %s28 = ssub.s32 %s15, %s27
    %p29 = scmp.eq.s32.totalorder %s28, 0
    %s31 = sadd.s32 %s30, 1
    %s32 = scalar_select %p29, %s30, %s31
    %p35 = pneg %p29
    %p36 = scmp.eq.s32.totalorder %s8, 3
    %p37 = por %p35, %p36
    %p38 = scmp.ne.s32.totalorder %s30, %s33
    %p39 = scmp.eq.s32.totalorder %s8, 0
    %p40 = por %p38, %p39
    %p41 = scmp.ne.s32.totalorder %s30, %s33
    %p42 = scmp.eq.s32.totalorder %s13, 3
    %p43 = por %p41, %p42
    %p44 = scmp.ne.s32.totalorder %s33, %s34
    %p45 = scmp.eq.s32.totalorder %s13, 0
    %p46 = por %p44, %p45
    %p47 = scmp.ne.s32.totalorder %s33, %s34
    %p48 = scmp.eq.s32.totalorder %s14, 3
    %p49 = por %p47, %p48
    %p51 = scmp.ne.s32.totalorder %s34, %s50
    %p52 = scmp.eq.s32.totalorder %s14, 0
    %p53 = por %p51, %p52
    %s54 = ssub.s32 %s15, %s27
    %s55 = ssub.s32 %s16, %s23
    %s56 = sor.u32 %s54, %s55
    %p57 = scmp.eq.s32.totalorder %s56, 0
    %s59 = sadd.s32 %s58, 1
    %s60 = scalar_select %p57, %s58, %s59
    %p63 = pneg %p57
    %p64 = scmp.eq.s32.totalorder %s8, 3
    %p65 = por %p63, %p64
    %p66 = scmp.ne.s32.totalorder %s58, %s61
    %p67 = scmp.eq.s32.totalorder %s8, 0
    %p68 = por %p66, %p67
    %p69 = scmp.ne.s32.totalorder %s58, %s61
    %p70 = scmp.eq.s32.totalorder %s13, 3
    %p71 = por %p69, %p70
    %p72 = scmp.ne.s32.totalorder %s61, %s62
    %p73 = scmp.eq.s32.totalorder %s13, 0
    %p74 = por %p72, %p73
    %p75 = scmp.ne.s32.totalorder %s61, %s62
    %p76 = scmp.eq.s32.totalorder %s14, 3
    %p77 = por %p75, %p76
    %p79 = scmp.ne.s32.totalorder %s62, %s78
    %p80 = scmp.eq.s32.totalorder %s14, 0
    %p81 = por %p79, %p80
    %s82 = ssub.s32 %s15, %s27
    %s83 = ssub.s32 %s16, %s23
    %s84 = sor.u32 %s82, %s83
    %p85 = scmp.eq.s32.totalorder %s84, 0
    %s87 = sadd.s32 %s86, 1
    %s88 = scalar_select %p85, %s86, %s87
    %p91 = pneg %p85
    %p92 = scmp.eq.s32.totalorder %s8, 3
    %p93 = por %p91, %p92
    %p94 = scmp.ne.s32.totalorder %s86, %s89
    %p95 = scmp.eq.s32.totalorder %s8, 0
    %p96 = por %p94, %p95
    %p97 = scmp.ne.s32.totalorder %s86, %s89
    %p98 = scmp.eq.s32.totalorder %s13, 3
    %p99 = por %p97, %p98
    %p100 = scmp.ne.s32.totalorder %s89, %s90
    %p101 = scmp.eq.s32.totalorder %s13, 0
    %p102 = por %p100, %p101
    %p103 = scmp.ne.s32.totalorder %s89, %s90
    %p104 = scmp.eq.s32.totalorder %s14, 3
    %p105 = por %p103, %p104
    %p107 = scmp.ne.s32.totalorder %s90, %s106
    %p108 = scmp.eq.s32.totalorder %s14, 0
    %p109 = por %p107, %p108
    %p110 = scmp.le.s32.totalorder 1, %s8
    %p111 = scmp.lt.s32.totalorder %s8, 5
    %p112 = pnand %p110, %p111
    %p113 = pneg %p112
    // Predicated region
    $region9: #{panet_forward.10} parent=5 // pred_check
      _
    $region10: #{panet_forward.10} parent=5 // pred_check_branch
      %115 = sbr.rel (%p112) target = $region12
    $region11: #{panet_forward.10} parent=5 // pred_region
      %s116 = ssub.s32 %s8, 1
    $region12: #{panet_forward.10} parent=5 // pred_fallthru
      _
    %p117 = scmp.lt.s32.totalorder %s8, 4
    // Predicated region
    $region13: #{panet_forward.10} parent=5 // pred_check
      %p118 = pneg %p117
    $region14: #{panet_forward.10} parent=5 // pred_check_branch
      %120 = sbr.rel (%p118) target = $region16
    $region15: #{panet_forward.10} parent=5 // pred_region
      // Predicated region
      $region17: #{panet_forward.10} parent=15 // pred_check
        %p121 = pneg %p40
      $region18: #{panet_forward.10} parent=15 // pred_check_branch
        %123 = sbr.rel (%p121) target = $region20
      $region19: #{panet_forward.10} parent=15 // pred_region
        %p124 = scmp.lt.s32.totalorder %s15, 3
        %s125 = scalar_select %p124, %s15, 3
        %s126 = scalar_lea.vmem %s0, %s125
      $region20: #{panet_forward.10} parent=15 // pred_fallthru
        _
      // Predicated region
      $region21: #{panet_forward.10} parent=15 // pred_check
        %p127 = pneg %p68
      $region22: #{panet_forward.10} parent=15 // pred_check_branch
        %129 = sbr.rel (%p127) target = $region24
      $region23: #{panet_forward.10} parent=15 // pred_region
        %s130 = smul.u32 16, %s16
        %p131 = scmp.lt.s32.totalorder %s15, 3
        %s132 = scalar_select %p131, %s15, 3
        %p133 = scmp.lt.s32.totalorder %s130, 15
        %s134 = scalar_select %p133, %s130, 15
        %s135 = smul.addr %s132, 16
        %s136 = sadd.s32 %s134, %s135
        %s137 = smul.addr %s136, 4
        %s138 = scalar_lea.vmem %s1, %s137
        %s139 = smul.u32 16, %s16
      $region24: #{panet_forward.10} parent=15 // pred_fallthru
        _
    $region16: #{panet_forward.10} parent=5 // pred_fallthru
      _
    %p140 = scmp.le.s32.totalorder 1, %s8
    %p141 = scmp.lt.s32.totalorder %s8, 5
    %p142 = pnand %p140, %p141
    %p143 = pneg %p142
    // Predicated region
    $region25: #{panet_forward.10} parent=5 // pred_check
      _
    $region26: #{panet_forward.10} parent=5 // pred_check_branch
      %145 = sbr.rel (%p142) target = $region28
    $region27: #{panet_forward.10} parent=5 // pred_region
      %s146 = ssub.s32 %s8, 1
      %p147 = scmp.lt.s32.totalorder %s17, 3
      %s148 = scalar_select %p147, %s17, 3
      %s149 = scalar_lea.vmem %s0, %s148
      %p150 = pneg %p46
      %p151 = pneg %p43
      %s152 = smul.u32 16, %s18
      %p153 = scmp.lt.s32.totalorder %s17, 3
      %s154 = scalar_select %p153, %s17, 3
      %p155 = scmp.lt.s32.totalorder %s152, 15
      %s156 = scalar_select %p155, %s152, 15
      %s157 = smul.addr %s154, 16
      %s158 = sadd.s32 %s156, %s157
      %s159 = smul.addr %s158, 4
      %s160 = scalar_lea.vmem %s1, %s159
      %p161 = pneg %p74
      %p162 = pneg %p71
      %p163 = pneg %p102
      %p164 = pneg %p99
      %p165 = scmp.lt.s32.totalorder %s17, 3
      %s166 = scalar_select %p165, %s17, 3
      %p167 = scmp.lt.s32.totalorder %s18, 0
      %s168 = scalar_select %p167, %s18, 0
      %s169 = sadd.s32 %s168, %s166
      %s170 = smul.addr %s169, 2
      %s171 = scalar_lea.vmem %s2, %s170
      %p172 = scmp.lt.s32.totalorder %s17, 3
      %s173 = scalar_select %p172, %s17, 3
      %s174 = scalar_lea.vmem %s0, %s173
      %s175 = smul.u32 16, %s18
      %p176 = scmp.lt.s32.totalorder %s17, 3
      %s177 = scalar_select %p176, %s17, 3
      %p178 = scmp.lt.s32.totalorder %s175, 15
      %s179 = scalar_select %p178, %s175, 15
      %s180 = smul.addr %s177, 16
      %s181 = sadd.s32 %s179, %s180
      %s182 = smul.addr %s181, 4
      %s183 = scalar_lea.vmem %s1, %s182
      %s184 = smul.u32 16, %s18
      %p185 = scmp.lt.s32.totalorder %s17, 3
      %s186 = scalar_select %p185, %s17, 3
      %p187 = scmp.lt.s32.totalorder %s18, 0
      %s188 = scalar_select %p187, %s18, 0
      %s189 = sadd.s32 %s188, %s186
      %s190 = smul.addr %s189, 2
      %s191 = scalar_lea.vmem %s2, %s190
      %v193 = vld [vmem:[%s174] sm:$0x1]
      %v194 = vld [vmem:[%s183] sm:$0xf]
      %v195 = vld [vmem:[%s183 + $0x4] sm:$0xf]
      %v196 = vld [vmem:[%s183 + $0x8] sm:$0xf]
      %v197 = vld [vmem:[%s183 + $0xc] sm:$0xf]
      %v198 = vld [vmem:[%s183 + $0x10] sm:$0xf]
      %v199 = vld [vmem:[%s183 + $0x14] sm:$0xf]
      %v200 = vld [vmem:[%s183 + $0x18] sm:$0xf]
      %v201 = vld [vmem:[%s183 + $0x1c] sm:$0xf]
      %v202 = vld [vmem:[%s183 + $0x20] sm:$0xf]
      %v203 = vld [vmem:[%s183 + $0x24] sm:$0xf]
      %v204 = vld [vmem:[%s183 + $0x28] sm:$0xf]
      %v205 = vld [vmem:[%s183 + $0x2c] sm:$0xf]
      %v206 = vld [vmem:[%s183 + $0x30] sm:$0xf]
      %v207 = vld [vmem:[%s183 + $0x34] sm:$0xf]
      %v208 = vld [vmem:[%s183 + $0x38] sm:$0xf]
      %v209 = vld [vmem:[%s183 + $0x3c] sm:$0xf]
      %v226 = vunpack.c.l.b16 %v194
      %v227 = vunpack.c.l.b16 %v195
      %v228 = vunpack.c.l.b16 %v196
      %v229 = vunpack.c.l.b16 %v197
      %v230 = vunpack.c.l.b16 %v198
      %v231 = vunpack.c.l.b16 %v199
      %v232 = vunpack.c.l.b16 %v200
      %v233 = vunpack.c.l.b16 %v201
      %v234 = vunpack.c.l.b16 %v202
      %v235 = vunpack.c.l.b16 %v203
      %v236 = vunpack.c.l.b16 %v204
      %v237 = vunpack.c.l.b16 %v205
      %v238 = vunpack.c.l.b16 %v206
      %v239 = vunpack.c.l.b16 %v207
      %v240 = vunpack.c.l.b16 %v208
      %v241 = vunpack.c.l.b16 %v209
      %v242 = vpack.c.b16 %v227, %v226
      %v243 = vpack.c.b16 %v229, %v228
      %v244 = vpack.c.b16 %v231, %v230
      %v245 = vpack.c.b16 %v233, %v232
      %v246 = vpack.c.b16 %v235, %v234
      %v247 = vpack.c.b16 %v237, %v236
      %v248 = vpack.c.b16 %v239, %v238
      %v249 = vpack.c.b16 %v241, %v240
      %vm250 = vcmask 261120
      %v252 = vsel %vm250, %v193, 0
      %v255 = vsel %vm250, %v242, 0
      %v258 = vsel %vm250, %v243, 0
      %v261 = vsel %vm250, %v244, 0
      %v264 = vsel %vm250, %v245, 0
      %v267 = vsel %vm250, %v246, 0
      %v270 = vsel %vm250, %v247, 0
      %v273 = vsel %vm250, %v248, 0
      %v276 = vsel %vm250, %v249, 0
      %278 = vmatprep.subr.bf16.mxu0 0
      %279 = vmatpush1.bf16.xpose.msra.mxu0 %v255
      %280 = vmatprep.subr.bf16.mxu0 0
      %281 = vmatpush1.bf16.xpose.msra.mxu0 %v258
      %282 = vmatprep.subr.bf16.mxu0 0
      %283 = vmatpush1.bf16.xpose.msra.mxu0 %v261
      %284 = vmatprep.subr.bf16.mxu0 0
      %285 = vmatpush1.bf16.xpose.msra.mxu0 %v264
      %286 = vmatprep.subr.bf16.mxu0 0
      %287 = vmatpush1.bf16.xpose.msra.mxu0 %v267
      %288 = vmatprep.subr.bf16.mxu0 0
      %289 = vmatpush1.bf16.xpose.msra.mxu0 %v270
      %290 = vmatprep.subr.bf16.mxu0 0
      %291 = vmatpush1.bf16.xpose.msra.mxu0 %v273
      %292 = vmatprep.subr.bf16.mxu0 0
      %293 = vmatpush1.bf16.xpose.msra.mxu0 %v276
      %294 = vmatprep.subr.bf16.mxu0 0
      %295 = vmatpush1.bf16.xpose.msra.mxu0 0
      %296 = vmatprep.subr.bf16.mxu0 0
      %297 = vmatpush1.bf16.xpose.msra.mxu0 0
      %298 = vmatprep.subr.bf16.mxu0 0
      %299 = vmatpush1.bf16.xpose.msra.mxu0 0
      %300 = vmatprep.subr.bf16.mxu0 0
      %301 = vmatpush1.bf16.xpose.msra.mxu0 0
      %302 = vmatprep.subr.bf16.mxu0 0
      %303 = vmatpush1.bf16.xpose.msra.mxu0 0
      %304 = vmatprep.subr.bf16.mxu0 0
      %305 = vmatpush1.bf16.xpose.msra.mxu0 0
      %306 = vmatprep.subr.bf16.mxu0 0
      %307 = vmatpush1.bf16.xpose.msra.mxu0 0
      %308 = vmatprep.subr.bf16.mxu0 0
      %309 = vmatpush1.bf16.xpose.msra.mxu0 0
      %310 = vmatprep.mubr.bf16.mxu0 0
      %311 = vmatmul.mubr.bf16.gmra.mrb[0].mxu0 %v252
      %v312 = vpop.f32.mrb[0].mxu0
      %v313 = vadd.f32 0.0, %v312
      %v314 = vpop.f32.mrb[0].mxu0
      %v315 = vpop.f32.mrb[0].mxu0
      %v316 = vpop.f32.mrb[0].mxu0
      %317 = vdwg.mxu0
      %v318 = vunpack.c.l.bf16 %v194
      %v319 = vunpack.c.l.bf16 %v195
      %v320 = vunpack.c.l.bf16 %v196
      %v321 = vunpack.c.l.bf16 %v197
      %v322 = vunpack.c.l.bf16 %v198
      %v323 = vunpack.c.l.bf16 %v199
      %v324 = vunpack.c.l.bf16 %v200
      %v325 = vunpack.c.l.bf16 %v201
      %v326 = vunpack.c.l.bf16 %v202
      %v327 = vunpack.c.l.bf16 %v203
      %v328 = vunpack.c.l.bf16 %v204
      %v329 = vunpack.c.l.bf16 %v205
      %v330 = vunpack.c.l.bf16 %v206
      %v331 = vunpack.c.l.bf16 %v207
      %v332 = vunpack.c.l.bf16 %v208
      %v333 = vunpack.c.l.bf16 %v209
      %v334 = vmul.f32 %v318, %v318
      %v335 = vmul.f32 %v319, %v319
      %v336 = vmul.f32 %v320, %v320
      %v337 = vmul.f32 %v321, %v321
      %v338 = vmul.f32 %v322, %v322
      %v339 = vmul.f32 %v323, %v323
      %v340 = vmul.f32 %v324, %v324
      %v341 = vmul.f32 %v325, %v325
      %v342 = vmul.f32 %v326, %v326
      %v343 = vmul.f32 %v327, %v327
      %v344 = vmul.f32 %v328, %v328
      %v345 = vmul.f32 %v329, %v329
      %v346 = vmul.f32 %v330, %v330
      %v347 = vmul.f32 %v331, %v331
      %v348 = vmul.f32 %v332, %v332
      %v349 = vmul.f32 %v333, %v333
      %v351 = vsel %vm250, 1.0, 0
      %v354 = vsel %vm250, %v334, 0
      %v357 = vsel %vm250, %v335, 0
      %v360 = vsel %vm250, %v336, 0
      %v363 = vsel %vm250, %v337, 0
      %v366 = vsel %vm250, %v338, 0
      %v369 = vsel %vm250, %v339, 0
      %v372 = vsel %vm250, %v340, 0
      %v375 = vsel %vm250, %v341, 0
      %v378 = vsel %vm250, %v342, 0
      %v381 = vsel %vm250, %v343, 0
      %v384 = vsel %vm250, %v344, 0
      %v387 = vsel %vm250, %v345, 0
      %v390 = vsel %vm250, %v346, 0
      %v393 = vsel %vm250, %v347, 0
      %v396 = vsel %vm250, %v348, 0
      %v399 = vsel %vm250, %v349, 0
      %401 = vmatprep.subr.mxu0 0.0
      %402 = vmatpush1.xpose.msra.mxu0 %v354
      %403 = vmatprep.subr.mxu0 0.0
      %404 = vmatpush1.xpose.msra.mxu0 %v357
      %405 = vmatprep.subr.mxu0 0.0
      %406 = vmatpush1.xpose.msra.mxu0 %v360
      %407 = vmatprep.subr.mxu0 0.0
      %408 = vmatpush1.xpose.msra.mxu0 %v363
      %409 = vmatprep.subr.mxu0 0.0
      %410 = vmatpush1.xpose.msra.mxu0 %v366
      %411 = vmatprep.subr.mxu0 0.0
      %412 = vmatpush1.xpose.msra.mxu0 %v369
      %413 = vmatprep.subr.mxu0 0.0
      %414 = vmatpush1.xpose.msra.mxu0 %v372
      %415 = vmatprep.subr.mxu0 0.0
      %416 = vmatpush1.xpose.msra.mxu0 %v375
      %417 = vmatprep.subr.mxu0 0.0
      %418 = vmatpush1.xpose.msra.mxu0 %v378
      %419 = vmatprep.subr.mxu0 0.0
      %420 = vmatpush1.xpose.msra.mxu0 %v381
      %421 = vmatprep.subr.mxu0 0.0
      %422 = vmatpush1.xpose.msra.mxu0 %v384
      %423 = vmatprep.subr.mxu0 0.0
      %424 = vmatpush1.xpose.msra.mxu0 %v387
      %425 = vmatprep.subr.mxu0 0.0
      %426 = vmatpush1.xpose.msra.mxu0 %v390
      %427 = vmatprep.subr.mxu0 0.0
      %428 = vmatpush1.xpose.msra.mxu0 %v393
      %429 = vmatprep.subr.mxu0 0.0
      %430 = vmatpush1.xpose.msra.mxu0 %v396
      %431 = vmatprep.subr.mxu0 0.0
      %432 = vmatpush1.xpose.msra.mxu0 %v399
      %433 = vmatprep.subr.mxu0 0.0
      %434 = vmatpush1.xpose.msra.mxu0 0.0
      %435 = vmatprep.subr.mxu0 0.0
      %436 = vmatpush1.xpose.msra.mxu0 0.0
      %437 = vmatprep.subr.mxu0 0.0
      %438 = vmatpush1.xpose.msra.mxu0 0.0
      %439 = vmatprep.subr.mxu0 0.0
      %440 = vmatpush1.xpose.msra.mxu0 0.0
      %441 = vmatprep.subr.mxu0 0.0
      %442 = vmatpush1.xpose.msra.mxu0 0.0
      %443 = vmatprep.subr.mxu0 0.0
      %444 = vmatpush1.xpose.msra.mxu0 0.0
      %445 = vmatprep.subr.mxu0 0.0
      %446 = vmatpush1.xpose.msra.mxu0 0.0
      %447 = vmatprep.subr.mxu0 0.0
      %448 = vmatpush1.xpose.msra.mxu0 0.0
      %449 = vmatprep.subr.mxu0 0.0
      %450 = vmatpush1.xpose.msra.mxu0 0.0
      %451 = vmatprep.subr.mxu0 0.0
      %452 = vmatpush1.xpose.msra.mxu0 0.0
      %453 = vmatprep.subr.mxu0 0.0
      %454 = vmatpush1.xpose.msra.mxu0 0.0
      %455 = vmatprep.subr.mxu0 0.0
      %456 = vmatpush1.xpose.msra.mxu0 0.0
      %457 = vmatprep.subr.mxu0 0.0
      %458 = vmatpush1.xpose.msra.mxu0 0.0
      %459 = vmatprep.subr.mxu0 0.0
      %460 = vmatpush1.xpose.msra.mxu0 0.0
      %461 = vmatprep.subr.mxu0 0.0
      %462 = vmatpush1.xpose.msra.mxu0 0.0
      %463 = vmatprep.subr.mxu0 0.0
      %464 = vmatpush1.xpose.msra.mxu0 0.0
      %465 = vmatprep.mubr.f32.mxu0 0.0
      %466 = vmatmul.mubr.f32.gmra.mrb[0].mxu0 %v351
      %v467 = vpop.f32.mrb[0].mxu0
      %v468 = vadd.f32 0.0, %v467
      %v469 = vpop.f32.mrb[0].mxu0
      %470 = vdwg.mxu0
      %v471 = vunpack.c.l.bf16 %v193
      %v472 = vmul.f32 %v471, %v471
      %vm473 = vcmask 254976
      %v474 = vsel %vm473, %v472, 0.0
      %475 = vadd.xlane.f32.xlu0 %v474
      %v476 = vpop.xlane.xlu0 %475
      %v477 = vmax.f32 %v468, 1e-16
      %v478 = vrsqrt.pop %v477
      %v479 = vmax.f32 %v476, 1e-16
      %v480 = vrsqrt.pop %v479
      %v481 = vlaneseq
      %v482 = vshrl.u32 %v481, 7
      %v483 = vsub.s32 0, %v482
      %v484 = vrot.slane %v478, %v483
      %v485 = vmul.f32 %v484, %v480
      %v486 = vmul.f32 %v313, %v485
      %v487 = vmul.f32 %v486, 20.0
      %488 = vst [vmem:[%s191] sm:$0x3] %v487
      %p489 = scmp.lt.s32.totalorder %s17, 3
      %s490 = scalar_select %p489, %s17, 3
      %p491 = scmp.lt.s32.totalorder %s18, 0
      %s492 = scalar_select %p491, %s18, 0
      %s493 = sadd.s32 %s492, %s490
      %s494 = smul.addr %s493, 2
      %s495 = scalar_lea.vmem %s2, %s494
      // Predicated region
      $region29: #{panet_forward.10} parent=27 // pred_check
        %p496 = pneg %p99
      $region30: #{panet_forward.10} parent=27 // pred_check_branch
        %498 = sbr.rel (%p496) target = $region32
      $region31: #{panet_forward.10} parent=27 // pred_region
        _
      $region32: #{panet_forward.10} parent=27 // pred_fallthru
        _
    $region28: #{panet_forward.10} parent=5 // pred_fallthru
      _
    %p499 = scmp.le.s32.totalorder 2, %s8
    // Predicated region
    $region33: #{panet_forward.10} parent=5 // pred_check
      %p500 = pneg %p499
    $region34: #{panet_forward.10} parent=5 // pred_check_branch
      %502 = sbr.rel (%p500) target = $region36
    $region35: #{panet_forward.10} parent=5 // pred_region
      %s503 = ssub.s32 %s8, 2
      // Predicated region
      $region37: #{panet_forward.10} parent=35 // pred_check
        %p504 = pneg %p105
      $region38: #{panet_forward.10} parent=35 // pred_check_branch
        %506 = sbr.rel (%p504) target = $region40
      $region39: #{panet_forward.10} parent=35 // pred_region
        %p507 = scmp.lt.s32.totalorder %s19, 3
        %s508 = scalar_select %p507, %s19, 3
        %p509 = scmp.lt.s32.totalorder %s20, 0
        %s510 = scalar_select %p509, %s20, 0
        %s511 = sadd.s32 %s510, %s508
        %s512 = smul.addr %s511, 2
        %s513 = scalar_lea.vmem %s2, %s512
      $region40: #{panet_forward.10} parent=35 // pred_fallthru
        _
    $region36: #{panet_forward.10} parent=5 // pred_fallthru
      _
  $region6: #{panet_forward.10} parent=0 // loop_footer
    %s12 = sadd.s32 1, %s8
  $region7: #{panet_forward.10} parent=0 // loop_footer_branch
    %7 = sbr.rel target = $region3
  $region8: #{panet_forward.10} parent=0 // loop_exit
    _

// kernel: squeeze.5
$region0: #{squeeze.5}
  %s0 = inlined_call_operand.vmem [shape: f32[4], index: 0, kind: input, shape index: {}]
  %s1 = inlined_call_operand.vmem [shape: f32[2,2], index: 1, kind: output, shape index: {}]
  $region1: #{squeeze.5} parent=0
    #allocation0 [shape = 'u8[4096]{0}', space=vmem, size = 0x1000, scoped, tag = 'scoped mem for output reshape']
    #allocation1 [shape = 'u8[4096]{0}', space=vmem, size = 0x1000, scoped, tag = 'scoped mem for input reshape']
    %s3 = sshllo.u32 0, 1
    %v4 = vld [vmem:[%s0] sm:%s3]
    %5 = vst [vmem:[#allocation1] sm:%s3] %v4
    %v6 = vld [vmem:[#allocation1] sm:$0x1]
    %vm7 = vcmask 15360
    %8 = vst.msk [vmem:[#allocation0] sm:$0x1] %vm7, %v6
    %v9 = vld [vmem:[#allocation1] sm:$0x1]
    %10 = vrot.lane.b32.xlu0 %v9, 126
    %v11 = vpop.permute.xlu0 %10
    %vm12 = vcmask 15360
    %s13 = scalar_lea.vmem [#allocation0], 1
    %14 = vst.msk [vmem:[%s13] sm:$0x1] %vm12, %v11
    %s16 = sshllo.u32 0, 2
    %v18 = vld [vmem:[#allocation0] sm:%s16]
    %s19 = sshllo.u32 0, 2
    %20 = vst [vmem:[%s1] sm:%s19] %v18

// kernel: panet_forward.11
$region0: #{panet_forward.11}
  #allocation0 [shape = 'u32[]', space=smem, size = 0x4, offset = 0x4, fixed_abs, tag = 'smem constant byte address 0x4 - core index']
  #allocation1 [shape = 'u32[144,128]{1,0:T(1,128)}', space=vmem, size = 0x12000, scoped, tag = 'internal scratch']
  #allocation2 [shape = 'f32[1,1]{1,0:T(1,128)}', space=vmem, size = 0x200, scoped, tag = 'scratch operand']
  %s0 = inlined_call_operand.vmem [shape: f32[4,2,256], index: 0, kind: input, shape index: {}]
  %s1 = inlined_call_operand.vmem [shape: f32[4,1,256], index: 1, kind: input, shape index: {}]
  %s2 = inlined_call_operand.vmem [shape: f32[4,1,128], index: 2, kind: output, shape index: {}]
  %s3 = sld [smem:[#allocation0]]
  $region49: #{panet_forward.11} parent=0
    _
  %s5 = ssub.s32 1, %s3
  %s6 = scalar_select 0, %s5, %s3
  loop: start=0, step=1, limit=6
  $region2: #{panet_forward.11} parent=0 // loop_pre_header
    _
  $region3: #{panet_forward.11} parent=0 // loop_header
    %s8 = sphi 0, %s12
    %p9 = scmp.ge.s32.totalorder %s8, 6
    %s15 = sphi 0, %s27
    %s16 = sphi 0, %s23
    %s17 = sphi 0, %s15
    %s18 = sphi 0, %s16
    %s19 = sphi 0, %s17
    %s20 = sphi 0, %s18
    %s32 = sphi 0, %s34
    %s35 = sphi 0, %s32
    %s36 = sphi 0, %s35
    %s52 = sphi 0, %s36
    %s60 = sphi 0, %s62
    %s63 = sphi 0, %s60
    %s64 = sphi 0, %s63
    %s80 = sphi 0, %s64
    %s86 = sphi 0, %s88
    %s89 = sphi 0, %s86
    %s90 = sphi 0, %s89
    %s106 = sphi 0, %s90
  $region4: #{panet_forward.11} parent=0 // loop_header_branch
    %11 = sbr.rel (%p9) target = $region8
  $region5: #{panet_forward.11} parent=0 // loop_body
    %s13 = ssub.s32 %s8, 1
    %s14 = ssub.s32 %s8, 2
    %s21 = sadd.s32 1, %s16
    %p22 = scmp.ge.s32.totalorder %s21, 1
    %s23 = scalar_select %p22, 0, %s21
    %s24 = sadd.s32 1, %s15
    %s25 = scalar_select %p22, %s24, %s15
    %p26 = scmp.ge.s32.totalorder %s25, 4
    %s27 = scalar_select %p26, 0, %s25
    %s28 = ssub.s32 %s15, %s27
    %s29 = ssub.s32 %s16, %s23
    %s30 = sor.u32 %s28, %s29
    %p31 = scmp.eq.s32.totalorder %s30, 0
    %s33 = sadd.s32 %s32, 1
    %s34 = scalar_select %p31, %s32, %s33
    %p37 = pneg %p31
    %p38 = scmp.eq.s32.totalorder %s8, 3
    %p39 = por %p37, %p38
    %p40 = scmp.ne.s32.totalorder %s32, %s35
    %p41 = scmp.eq.s32.totalorder %s8, 0
    %p42 = por %p40, %p41
    %p43 = scmp.ne.s32.totalorder %s32, %s35
    %p44 = scmp.eq.s32.totalorder %s13, 3
    %p45 = por %p43, %p44
    %p46 = scmp.ne.s32.totalorder %s35, %s36
    %p47 = scmp.eq.s32.totalorder %s13, 0
    %p48 = por %p46, %p47
    %p49 = scmp.ne.s32.totalorder %s35, %s36
    %p50 = scmp.eq.s32.totalorder %s14, 3
    %p51 = por %p49, %p50
    %p53 = scmp.ne.s32.totalorder %s36, %s52
    %p54 = scmp.eq.s32.totalorder %s14, 0
    %p55 = por %p53, %p54
    %s56 = ssub.s32 %s15, %s27
    %s57 = ssub.s32 %s16, %s23
    %s58 = sor.u32 %s56, %s57
    %p59 = scmp.eq.s32.totalorder %s58, 0
    %s61 = sadd.s32 %s60, 1
    %s62 = scalar_select %p59, %s60, %s61
    %p65 = pneg %p59
    %p66 = scmp.eq.s32.totalorder %s8, 3
    %p67 = por %p65, %p66
    %p68 = scmp.ne.s32.totalorder %s60, %s63
    %p69 = scmp.eq.s32.totalorder %s8, 0
    %p70 = por %p68, %p69
    %p71 = scmp.ne.s32.totalorder %s60, %s63
    %p72 = scmp.eq.s32.totalorder %s13, 3
    %p73 = por %p71, %p72
    %p74 = scmp.ne.s32.totalorder %s63, %s64
    %p75 = scmp.eq.s32.totalorder %s13, 0
    %p76 = por %p74, %p75
    %p77 = scmp.ne.s32.totalorder %s63, %s64
    %p78 = scmp.eq.s32.totalorder %s14, 3
    %p79 = por %p77, %p78
    %p81 = scmp.ne.s32.totalorder %s64, %s80
    %p82 = scmp.eq.s32.totalorder %s14, 0
    %p83 = por %p81, %p82
    %s84 = ssub.s32 %s15, %s27
    %p85 = scmp.eq.s32.totalorder %s84, 0
    %s87 = sadd.s32 %s86, 1
    %s88 = scalar_select %p85, %s86, %s87
    %p91 = pneg %p85
    %p92 = scmp.eq.s32.totalorder %s8, 3
    %p93 = por %p91, %p92
    %p94 = scmp.ne.s32.totalorder %s86, %s89
    %p95 = scmp.eq.s32.totalorder %s8, 0
    %p96 = por %p94, %p95
    %p97 = scmp.ne.s32.totalorder %s86, %s89
    %p98 = scmp.eq.s32.totalorder %s13, 3
    %p99 = por %p97, %p98
    %p100 = scmp.ne.s32.totalorder %s89, %s90
    %p101 = scmp.eq.s32.totalorder %s13, 0
    %p102 = por %p100, %p101
    %p103 = scmp.ne.s32.totalorder %s89, %s90
    %p104 = scmp.eq.s32.totalorder %s14, 3
    %p105 = por %p103, %p104
    %p107 = scmp.ne.s32.totalorder %s90, %s106
    %p108 = scmp.eq.s32.totalorder %s14, 0
    %p109 = por %p107, %p108
    %p110 = scmp.le.s32.totalorder 1, %s8
    %p111 = scmp.lt.s32.totalorder %s8, 5
    %p112 = pnand %p110, %p111
    %p113 = pneg %p112
    // Predicated region
    $region9: #{panet_forward.11} parent=5 // pred_check
      _
    $region10: #{panet_forward.11} parent=5 // pred_check_branch
      %115 = sbr.rel (%p112) target = $region12
    $region11: #{panet_forward.11} parent=5 // pred_region
      %s116 = ssub.s32 %s8, 1
    $region12: #{panet_forward.11} parent=5 // pred_fallthru
      _
    %p117 = scmp.lt.s32.totalorder %s8, 4
    // Predicated region
    $region13: #{panet_forward.11} parent=5 // pred_check
      %p118 = pneg %p117
    $region14: #{panet_forward.11} parent=5 // pred_check_branch
      %120 = sbr.rel (%p118) target = $region16
    $region15: #{panet_forward.11} parent=5 // pred_region
      // Predicated region
      $region17: #{panet_forward.11} parent=15 // pred_check
        %p121 = pneg %p42
      $region18: #{panet_forward.11} parent=15 // pred_check_branch
        %123 = sbr.rel (%p121) target = $region20
      $region19: #{panet_forward.11} parent=15 // pred_region
        %s124 = smul.u32 2, %s16
        %p125 = scmp.lt.s32.totalorder %s15, 3
        %s126 = scalar_select %p125, %s15, 3
        %p127 = scmp.lt.s32.totalorder %s124, 1
        %s128 = scalar_select %p127, %s124, 1
        %s129 = smul.addr %s126, 2
        %s130 = sadd.s32 %s128, %s129
        %s131 = smul.addr %s130, 2
        %s132 = scalar_lea.vmem %s0, %s131
        %s133 = smul.u32 2, %s16
      $region20: #{panet_forward.11} parent=15 // pred_fallthru
        _
      // Predicated region
      $region21: #{panet_forward.11} parent=15 // pred_check
        %p134 = pneg %p70
      $region22: #{panet_forward.11} parent=15 // pred_check_branch
        %136 = sbr.rel (%p134) target = $region24
      $region23: #{panet_forward.11} parent=15 // pred_region
        %s137 = smul.u32 2, %s16
        %p138 = scmp.lt.s32.totalorder %s15, 3
        %s139 = scalar_select %p138, %s15, 3
        %p140 = scmp.lt.s32.totalorder %s137, 1
        %s141 = scalar_select %p140, %s137, 1
        %s142 = smul.addr %s139, 2
        %s143 = sadd.s32 %s141, %s142
        %s144 = scalar_lea.vmem %s1, %s143
        %s145 = smul.u32 2, %s16
      $region24: #{panet_forward.11} parent=15 // pred_fallthru
        _
    $region16: #{panet_forward.11} parent=5 // pred_fallthru
      _
    %p146 = scmp.le.s32.totalorder 1, %s8
    %p147 = scmp.lt.s32.totalorder %s8, 5
    %p148 = pnand %p146, %p147
    %p149 = pneg %p148
    // Predicated region
    $region25: #{panet_forward.11} parent=5 // pred_check
      _
    $region26: #{panet_forward.11} parent=5 // pred_check_branch
      %151 = sbr.rel (%p148) target = $region28
    $region27: #{panet_forward.11} parent=5 // pred_region
      %s152 = ssub.s32 %s8, 1
      %s153 = smul.u32 2, %s18
      %p154 = scmp.lt.s32.totalorder %s17, 3
      %s155 = scalar_select %p154, %s17, 3
      %p156 = scmp.lt.s32.totalorder %s153, 1
      %s157 = scalar_select %p156, %s153, 1
      %s158 = smul.addr %s155, 2
      %s159 = sadd.s32 %s157, %s158
      %s160 = smul.addr %s159, 2
      %s161 = scalar_lea.vmem %s0, %s160
      %p162 = pneg %p48
      %p163 = pneg %p45
      %s164 = smul.u32 2, %s18
      %p165 = scmp.lt.s32.totalorder %s17, 3
      %s166 = scalar_select %p165, %s17, 3
      %p167 = scmp.lt.s32.totalorder %s164, 1
      %s168 = scalar_select %p167, %s164, 1
      %s169 = smul.addr %s166, 2
      %s170 = sadd.s32 %s168, %s169
      %s171 = scalar_lea.vmem %s1, %s170
      %p172 = pneg %p76
      %p173 = pneg %p73
      %p174 = pneg %p102
      %p175 = pneg %p99
      %p176 = scmp.lt.s32.totalorder %s17, 3
      %s177 = scalar_select %p176, %s17, 3
      %s178 = scalar_lea.vmem %s2, %s177
      %s179 = smul.u32 2, %s18
      %p180 = scmp.lt.s32.totalorder %s17, 3
      %s181 = scalar_select %p180, %s17, 3
      %p182 = scmp.lt.s32.totalorder %s179, 1
      %s183 = scalar_select %p182, %s179, 1
      %s184 = smul.addr %s181, 2
      %s185 = sadd.s32 %s183, %s184
      %s186 = smul.addr %s185, 2
      %s187 = scalar_lea.vmem %s0, %s186
      %s188 = smul.u32 2, %s18
      %s189 = smul.u32 2, %s18
      %p190 = scmp.lt.s32.totalorder %s17, 3
      %s191 = scalar_select %p190, %s17, 3
      %p192 = scmp.lt.s32.totalorder %s189, 1
      %s193 = scalar_select %p192, %s189, 1
      %s194 = smul.addr %s191, 2
      %s195 = sadd.s32 %s193, %s194
      %s196 = scalar_lea.vmem %s1, %s195
      %s197 = smul.u32 2, %s18
      %p198 = scmp.lt.s32.totalorder %s17, 3
      %s199 = scalar_select %p198, %s17, 3
      %s200 = scalar_lea.vmem %s2, %s199
      %p201 = scmp.eq.s32.totalorder %s18, 0
      // Predicated region
      $region29: #{panet_forward.11} parent=27 // pred_check
        %p202 = pneg %p201
      $region30: #{panet_forward.11} parent=27 // pred_check_branch
        %204 = sbr.rel (%p202) target = $region32
      $region31: #{panet_forward.11} parent=27 // pred_region
        %vm205 = vcmask 0
        %206 = vst.msk [vmem:[#allocation2] sm:$0x1] %vm205, 0.0
      $region32: #{panet_forward.11} parent=27 // pred_fallthru
        _
      %v207 = vld [vmem:[%s187] sm:$0xf]
      %v208 = vld [vmem:[%s196] sm:$0x3]
      %v210 = vrot.slane %v207, 7
      %v211 = vrot.slane %v210, 2
      %v213 = vmax.f32 %v207, %v211
      %v214 = vsub.f32 %v207, %v213
      %v215 = vmul.f32 %v214, 1.442695
      %v216 = vpow.pop %v215
      %v218 = vrot.slane %v213, 7
      %v220 = vsub.f32 %v207, %v218
      %v221 = vmul.f32 %v220, 1.442695
      %v222 = vpow.pop %v221
      %v224 = vrot.slane %v222, 7
      %v225 = vrot.slane %v224, 2
      %v227 = vadd.f32 %v216, %v225
      %v228 = vlog2.pop %v227
      %v229 = vmul.f32 %v228, 0.6931472
      %v230 = vadd.f32 %v213, %v229
      %vm231 = vcmp.gt.f32.partialorder %v208, 0.5
      %v233 = vunpack.c.l.s4 1966171168
      %v234 = vunpack.c.0.s8 %v233
      %v235 = vlaneseq
      %v236 = vshrl.u32 %v235, 7
      %v237 = vsub.s32 %v234, %v236
      %v238 = vrot.slane %v207, %v237
      %v239 = vcombine.high %v238, %v238
      %v242 = vsel %vm231, %v239, %v238
      %s243 = smul.u32 %s18, 256
      %v244 = vlaneseq
      %v245 = vand.u32 %v244, 127
      %v246 = vadd.s32 %v245, 128
      %v247 = vstv %s243
      %v248 = vadd.s32 %v247, %v245
      %v249 = vadd.s32 %v247, %v246
      %vm250 = vcmp.lt.s32.totalorder %v248, 256
      %vm251 = vcmp.lt.s32.totalorder %v249, 256
      %v252 = vsel %vm250, 1, 0
      %v253 = vsel %vm251, 1, 0
      %v254 = vcvt.s32.f32 %v252
      %v255 = vcvt.s32.f32 %v253
      %v256 = vld [vmem:[#allocation2] sm:$0x1]
      %v259 = vunpack.c.l.s4 857870592
      %v260 = vunpack.c.0.s8 %v259
      %v261 = vlaneseq
      %v262 = vshrl.u32 %v261, 7
      %v263 = vsub.s32 %v260, %v262
      %v264 = vrot.slane %v242, %v263
      %v266 = vsub.f32 %v230, %v264
      %v269 = vcombine.low %v254, %v255
      %v271 = vunpack.c.l.s4 1983009808
      %v272 = vunpack.c.0.s8 %v271
      %v273 = vlaneseq
      %v274 = vshrl.u32 %v273, 7
      %v275 = vsub.s32 %v272, %v274
      %v276 = vrot.slane %v269, %v275
      %v278 = vmul.f32 %v266, %v276
      %v280 = vlaneseq
      %v281 = vshrl.u32 %v280, 7
      %v282 = vsub.s32 0, %v281
      %v283 = vrot.slane %v278, %v282
      %v284 = vlaneseq
      %v285 = vshrl.u32 %v284, 7
      %v286 = vsub.s32 2, %v285
      %v287 = vrot.slane %v278, %v286
      %vm290 = vcmask 1040384
      %v291 = vsel %vm290, %v283, 0.0
      %v292 = vsel %vm290, %v287, 0.0
      %v293 = vadd.f32 %v291, %v292
      %294 = vadd.xlane.f32.xlu0 %v293
      %v295 = vpop.xlane.xlu0 %294
      %v296 = vrot.slane %v295, 4
      %v297 = vadd.f32 %v295, %v296
      %v298 = vrot.slane %v297, 2
      %v299 = vadd.f32 %v297, %v298
      %v300 = vrot.slane %v299, 1
      %v301 = vadd.f32 %v299, %v300
      %s302 = vtos %v301
      %v303 = vstv %s302
      %v304 = vadd.f32 %v256, %v303
      %vm305 = vcmask 0
      %306 = vst.msk [vmem:[#allocation2] sm:$0x1] %vm305, %v304
      // Predicated region
      $region33: #{panet_forward.11} parent=27 // pred_check
        %p307 = pneg %p201
      $region34: #{panet_forward.11} parent=27 // pred_check_branch
        %309 = sbr.rel (%p307) target = $region36
      $region35: #{panet_forward.11} parent=27 // pred_region
        %v310 = vld [vmem:[#allocation2] sm:$0x1]
        %v311 = vrcp.pop 256.0
        %v312 = vmul.f32 %v310, %v311
        %314 = vset.pattern.permute.xlu0 0
        %315 = vperm.xlu0 %314, %v312
        %v316 = vpop.permute.xlu0 %315
        %v318 = vlaneseq
        %v319 = vshrl.u32 %v318, 7
        %v320 = vsub.s32 0, %v319
        %v321 = vrot.slane %v316, %v320
        %322 = vst [vmem:[%s200] sm:$0x1] %v321
      $region36: #{panet_forward.11} parent=27 // pred_fallthru
        _
      %p323 = scmp.lt.s32.totalorder %s17, 3
      %s324 = scalar_select %p323, %s17, 3
      %s325 = scalar_lea.vmem %s2, %s324
      // Predicated region
      $region37: #{panet_forward.11} parent=27 // pred_check
        %p326 = pneg %p99
      $region38: #{panet_forward.11} parent=27 // pred_check_branch
        %328 = sbr.rel (%p326) target = $region40
      $region39: #{panet_forward.11} parent=27 // pred_region
        _
      $region40: #{panet_forward.11} parent=27 // pred_fallthru
        _
    $region28: #{panet_forward.11} parent=5 // pred_fallthru
      _
    %p329 = scmp.le.s32.totalorder 2, %s8
    // Predicated region
    $region41: #{panet_forward.11} parent=5 // pred_check
      %p330 = pneg %p329
    $region42: #{panet_forward.11} parent=5 // pred_check_branch
      %332 = sbr.rel (%p330) target = $region44
    $region43: #{panet_forward.11} parent=5 // pred_region
      %s333 = ssub.s32 %s8, 2
      // Predicated region
      $region45: #{panet_forward.11} parent=43 // pred_check
        %p334 = pneg %p105
      $region46: #{panet_forward.11} parent=43 // pred_check_branch
        %336 = sbr.rel (%p334) target = $region48
      $region47: #{panet_forward.11} parent=43 // pred_region
        %p337 = scmp.lt.s32.totalorder %s19, 3
        %s338 = scalar_select %p337, %s19, 3
        %s339 = scalar_lea.vmem %s2, %s338
      $region48: #{panet_forward.11} parent=43 // pred_fallthru
        _
    $region44: #{panet_forward.11} parent=5 // pred_fallthru
      _
  $region6: #{panet_forward.11} parent=0 // loop_footer
    %s12 = sadd.s32 1, %s8
  $region7: #{panet_forward.11} parent=0 // loop_footer_branch
    %7 = sbr.rel target = $region3
  $region8: #{panet_forward.11} parent=0 // loop_exit
    _

</llo_original>
